<compile_context>
chip_gen: v7x
topology: tpu7x:2x2x1
jax: 0.10.0
libtpu: 0.0.40
codegen_flags: <defaults>
</compile_context>

<pallas_src>
import functools

import jax
import jax.numpy as jnp
from jax.experimental import pallas as pl
from jax.experimental.pallas import tpu as pltpu

LANE = 128


def _round_up(x, m):
    return ((x + m - 1) // m) * m


def _pick_band_rows(H, W, fpad):
    # Budget the per-band f32 conv activation (band_rows*W, fpad) to ~4 MiB and
    # cap at ~2048 spatial positions; extra bands are an in-kernel loop (a few
    # cycles each), not extra ~0.35 us grid steps.
    target_m = max(W, min(2048, (4 * 1024 * 1024) // (4 * fpad)))
    th = max(1, min(H, target_m // W))
    while H % th:
        th -= 1
    return th


# ---------------------------------------------------------------------------
# Fused kernel (one batch element per grid step):
#   in-VMEM im2col -> conv-as-matmul (BN scale folded) -> +shift -> ReLU ->
#   MXU partial global-average-pool -> FC -> stable sigmoid.
#
#   x_ref     : (H+2, W+2, C)  bf16  zero-padded NHWC image (VMEM resident)
#   w_ref     : (kpad, fpad)   bf16  BN-scale-folded conv weight (resident)
#   shift_ref : (1, fpad)      f32   BN shift (post-matmul add)
#   fcw_ref   : (fpad, ncpad)  bf16  FC weight (resident)
#   fcb_ref   : (1, ncpad)     f32   FC bias (resident)
#   o_ref     : (1, ncpad)     f32   logits / probabilities
# ---------------------------------------------------------------------------
def fused_stem_head_kernel(x_ref, w_ref, shift_ref, fcw_ref, fcb_ref, o_ref,
                           *, H, W, C, band_rows, multi_label):
    kpad = w_ref.shape[0]
    fpad = w_ref.shape[1]
    n_bands = H // band_rows
    band_m = band_rows * W                      # spatial positions per band

    ones_row = jnp.ones((1, band_m), jnp.bfloat16)   # hoisted (not re-broadcast per band)
    shift = shift_ref[...]                           # (1, fpad) f32, hoisted

    acc = jnp.zeros((1, fpad), jnp.float32)          # pooled-sum accumulator (loop carry)
    # Static Python loop: n_bands is small; fully unrolled so the scheduler can
    # overlap slice/concat (XLU) with the matmuls (MXU) across bands.
    for band in range(n_bands):
        r0 = band * band_rows
        # In-VMEM im2col: nine shifted (band_rows, W, C) windows of the padded
        # image, concatenated along the tap axis (di-major, dj, channel order).
        segs = [x_ref[r0 + di:r0 + di + band_rows, dj:dj + W, :]
                for di in range(3) for dj in range(3)]
        if kpad > 9 * C:                              # pad K to a multiple of 8
            segs.append(jnp.zeros((band_rows, W, kpad - 9 * C), jnp.bfloat16))
        patches = jnp.concatenate(segs, axis=-1)      # (band_rows, W, kpad) bf16
        # f32 staging keeps the (band_rows, W) -> (band_rows*W) collapse on the
        # 8-sublane tile (wrapper asserts W % 8 == 0); cast to bf16 just before
        # the MXU (v5e keeps elementwise work in f32).
        patches = patches.astype(jnp.float32).reshape(band_m, kpad)
        patches = patches.astype(jnp.bfloat16)
        # conv-as-matmul on the MXU, bf16 x bf16 -> f32 accumulation.
        y = jnp.dot(patches, w_ref[...], preferred_element_type=jnp.float32)
        y = jnp.maximum(y + shift, 0.0)               # BN shift (f32) + ReLU (VPU)
        # Partial global-average-pool on the otherwise idle MXU:
        # (1, band_m) @ (band_m, fpad) replaces the VPU row-reduce.
        acc = acc + jnp.dot(ones_row, y.astype(jnp.bfloat16),
                            preferred_element_type=jnp.float32)

    pooled = acc * (1.0 / (H * W))                    # (1, fpad) f32
    logits = jnp.dot(pooled.astype(jnp.bfloat16), fcw_ref[...],
                     preferred_element_type=jnp.float32) + fcb_ref[...]
    if multi_label:
        # Numerically stable sigmoid with an exact divide (once per image).
        z = jnp.exp(-jnp.abs(logits))
        inv = 1.0 / (1.0 + z)
        logits = jnp.where(logits >= 0.0, inv, z * inv)
    o_ref[...] = logits


@functools.partial(jax.jit, static_argnames=("multi_label", "band_rows"))
def flag_classifier_forward(x_nchw, params, multi_label=True, band_rows=None):
    B, C, H, W = x_nchw.shape
    F = params["conv_w"].shape[1]
    NC = params["fc_w"].shape[1]

    assert W % 8 == 0, "kernel assumes sublane-tile friendly width (W % 8 == 0)"

    kpad = _round_up(9 * C, 8)         # conv taps, padded to a sublane multiple
    fpad = _round_up(F, LANE)          # lane-dense stem features
    ncpad = _round_up(NC, LANE)        # lane-dense logits

    if band_rows is None:
        band_rows = _pick_band_rows(H, W, fpad)
    assert H % band_rows == 0, (H, band_rows)

    # --- fold BatchNorm (inference) scale into the conv weight; keep shift f32 ---
    scale = params["bn_gamma"] * jax.lax.rsqrt(params["bn_var"] + params["bn_eps"])
    shift = params["bn_beta"] - params["bn_mean"] * scale
    w = jnp.zeros((kpad, fpad), jnp.float32)
    w = w.at[:9 * C, :F].set(params["conv_w"] * scale[None, :]).astype(jnp.bfloat16)
    shift_row = jnp.zeros((1, fpad), jnp.float32).at[0, :F].set(shift)
    fcw = jnp.zeros((fpad, ncpad), jnp.float32).at[:F, :NC].set(
        params["fc_w"]).astype(jnp.bfloat16)
    fcb = jnp.zeros((1, ncpad), jnp.float32).at[0, :NC].set(params["fc_b"])

    # --- raw zero-padded NHWC image, bf16 (no im2col materialized in HBM) ---------
    x_nhwc = jnp.transpose(x_nchw, (0, 2, 3, 1))
    xpad = jnp.pad(x_nhwc, ((0, 0), (1, 1), (1, 1), (0, 0))).astype(jnp.bfloat16)
    Hp, Wp = H + 2, W + 2

    kernel = functools.partial(
        fused_stem_head_kernel,
        H=H, W=W, C=C, band_rows=band_rows, multi_label=multi_label)

    out = pl.pallas_call(
        kernel,
        out_shape=jax.ShapeDtypeStruct((B, 1, ncpad), jnp.float32),
        grid_spec=pltpu.PrefetchScalarGridSpec(
            num_scalar_prefetch=0,
            grid=(B,),
            in_specs=[
                pl.BlockSpec((None, Hp, Wp, C), lambda b: (b, 0, 0, 0)),  # image
                pl.BlockSpec((kpad, fpad), lambda b: (0, 0)),             # conv w (resident)
                pl.BlockSpec((1, fpad), lambda b: (0, 0)),                # BN shift
                pl.BlockSpec((fpad, ncpad), lambda b: (0, 0)),            # fc w
                pl.BlockSpec((1, ncpad), lambda b: (0, 0)),               # fc b
            ],
            out_specs=pl.BlockSpec((None, 1, ncpad), lambda b: (b, 0, 0)),
        ),
        compiler_params=pltpu.CompilerParams(
            dimension_semantics=("parallel",),        # batch across megacore TCs
            vmem_limit_bytes=48 * 1024 * 1024,
        ),
    )(xpad, w, shift_row, fcw, fcb)
    return out[:, 0, :NC]


# ---------------------------------------------------------------------------
# Pure-JAX reference (f32) for correctness validation.
# ---------------------------------------------------------------------------
def reference_forward(x_nchw, params, multi_label=True):
    B, C, H, W = x_nchw.shape
    x = jnp.transpose(x_nchw, (0, 2, 3, 1)).astype(jnp.float32)
    xp = jnp.pad(x, ((0, 0), (1, 1), (1, 1), (0, 0)))
    cols = [xp[:, di:di + H, dj:dj + W, :] for di in range(3) for dj in range(3)]
    patches = jnp.concatenate(cols, axis=-1).reshape(B, H * W, 9 * C)
    y = jnp.einsum("bmk,kf->bmf", patches, params["conv_w"])
    scale = params["bn_gamma"] / jnp.sqrt(params["bn_var"] + params["bn_eps"])
    y = y * scale + (params["bn_beta"] - params["bn_mean"] * scale)
    y = jnp.maximum(y, 0.0)
    pooled = jnp.mean(y, axis=1)                                   # (B, F)
    logits = pooled @ params["fc_w"] + params["fc_b"]
    if multi_label:
        logits = jax.nn.sigmoid(logits)
    return logits


# ---------------------------------------------------------------------------
# Deterministic synthetic parameters (no checkpoint load).
# ---------------------------------------------------------------------------
def make_params(key, C=4, F=32, num_classes=8):
    k1, k2, k3, k4, k5, k6, k7 = jax.random.split(key, 7)
    return {
        "conv_w": 0.1 * jax.random.normal(k1, (9 * C, F), jnp.float32),
        "bn_gamma": 1.0 + 0.1 * jax.random.normal(k2, (F,), jnp.float32),
        "bn_beta": 0.1 * jax.random.normal(k3, (F,), jnp.float32),
        "bn_mean": 0.05 * jax.random.normal(k6, (F,), jnp.float32),
        "bn_var": 1.0 + 0.1 * jax.random.uniform(k7, (F,), jnp.float32),
        "bn_eps": 1e-5,
        "fc_w": 0.1 * jax.random.normal(k4, (F, num_classes), jnp.float32),
        "fc_b": 0.01 * jax.random.normal(k5, (num_classes,), jnp.float32),
    }


if __name__ == "__main__":
    key = jax.random.PRNGKey(0)
    k_x, k_p = jax.random.split(key)

    B, C, H, W = 2, 4, 16, 16          # small NCHW input (PyTorch convention)
    num_classes = 8
    multi_label = True                  # config.USE_MULTI_LABEL -> sigmoid applied

    x = jax.random.normal(k_x, (B, C, H, W), jnp.float32)
    params = make_params(k_p, C=C, F=32, num_classes=num_classes)

    # band_rows=4 -> 4 in-kernel pooling bands per image (exercises the band
    # loop); the production default picks ~2048 spatial positions per band.
    out = flag_classifier_forward(x, params, multi_label=multi_label, band_rows=4)
    out = jax.block_until_ready(out)

    ref = reference_forward(x, params, multi_label=multi_label)

    assert out.shape == (B, num_classes), out.shape
    assert bool(jnp.all(jnp.isfinite(out)))
    if multi_label:
        assert bool(jnp.all((out >= 0.0) & (out <= 1.0)))
    assert bool(jnp.allclose(out, ref, atol=2e-2, rtol=2e-2)), (out, ref)
    print("KERNEL_OK")
</pallas_src>

<mosaic_0001>
module attributes {stable_mosaic.version = 11 : i64} {
  func.func @fused_stem_head_kernel(%arg0: i32, %arg1: memref<1x18x18x4xbf16, #tpu.memory_space<vmem>>, %arg2: memref<40x128xbf16, #tpu.memory_space<vmem>>, %arg3: memref<1x128xf32, #tpu.memory_space<vmem>>, %arg4: memref<128x128xbf16, #tpu.memory_space<vmem>>, %arg5: memref<1x128xf32, #tpu.memory_space<vmem>>, %arg6: memref<1x1x128xf32, #tpu.memory_space<vmem>>) attributes {dimension_semantics = [#tpu.dimension_semantics<parallel>], iteration_bounds = array<i64: 2>, scalar_prefetch = 0 : i64, scratch_operands = 0 : i64, tpu.core_type = #tpu.core_type<tc>, window_params = [{transform_indices = @transform_0, window_bounds = array<i64: 1, 18, 18, 4>}, {pipeline_mode = #tpu.pipeline_mode<synchronous>, transform_indices = @transform_1, window_bounds = array<i64: 40, 128>}, {pipeline_mode = #tpu.pipeline_mode<synchronous>, transform_indices = @transform_2, window_bounds = array<i64: 1, 128>}, {pipeline_mode = #tpu.pipeline_mode<synchronous>, transform_indices = @transform_3, window_bounds = array<i64: 128, 128>}, {pipeline_mode = #tpu.pipeline_mode<synchronous>, transform_indices = @transform_4, window_bounds = array<i64: 1, 128>}, {transform_indices = @transform_5, window_bounds = array<i64: 1, 1, 128>}]} {
    %cst = arith.constant 1.000000e+00 : bf16
    %0 = vector.broadcast %cst : bf16 to vector<1x64xbf16>
    %c0 = arith.constant 0 : index
    %c0_0 = arith.constant 0 : index
    %1 = vector.load %arg3[%c0, %c0_0] : memref<1x128xf32, #tpu.memory_space<vmem>>, vector<1x128xf32>
    %cst_1 = arith.constant 0.000000e+00 : f32
    %2 = vector.broadcast %cst_1 : f32 to vector<1x128xf32>
    %c0_2 = arith.constant 0 : index
    %c0_3 = arith.constant 0 : index
    %c0_4 = arith.constant 0 : index
    %c0_5 = arith.constant 0 : index
    %3 = vector.load %arg1[%c0_2, %c0_3, %c0_4, %c0_5] : memref<1x18x18x4xbf16, #tpu.memory_space<vmem>>, vector<1x4x16x4xbf16>
    %4 = vector.shape_cast %3 : vector<1x4x16x4xbf16> to vector<4x16x4xbf16>
    %c0_6 = arith.constant 0 : index
    %c0_7 = arith.constant 0 : index
    %c1 = arith.constant 1 : index
    %c0_8 = arith.constant 0 : index
    %5 = vector.load %arg1[%c0_6, %c0_7, %c1, %c0_8] : memref<1x18x18x4xbf16, #tpu.memory_space<vmem>>, vector<1x4x16x4xbf16>
    %6 = vector.shape_cast %5 : vector<1x4x16x4xbf16> to vector<4x16x4xbf16>
    %c0_9 = arith.constant 0 : index
    %c0_10 = arith.constant 0 : index
    %c2 = arith.constant 2 : index
    %c0_11 = arith.constant 0 : index
    %7 = vector.load %arg1[%c0_9, %c0_10, %c2, %c0_11] : memref<1x18x18x4xbf16, #tpu.memory_space<vmem>>, vector<1x4x16x4xbf16>
    %8 = vector.shape_cast %7 : vector<1x4x16x4xbf16> to vector<4x16x4xbf16>
    %c0_12 = arith.constant 0 : index
    %c1_13 = arith.constant 1 : index
    %c0_14 = arith.constant 0 : index
    %c0_15 = arith.constant 0 : index
    %9 = vector.load %arg1[%c0_12, %c1_13, %c0_14, %c0_15] : memref<1x18x18x4xbf16, #tpu.memory_space<vmem>>, vector<1x4x16x4xbf16>
    %10 = vector.shape_cast %9 : vector<1x4x16x4xbf16> to vector<4x16x4xbf16>
    %c0_16 = arith.constant 0 : index
    %c1_17 = arith.constant 1 : index
    %c1_18 = arith.constant 1 : index
    %c0_19 = arith.constant 0 : index
    %11 = vector.load %arg1[%c0_16, %c1_17, %c1_18, %c0_19] : memref<1x18x18x4xbf16, #tpu.memory_space<vmem>>, vector<1x4x16x4xbf16>
    %12 = vector.shape_cast %11 : vector<1x4x16x4xbf16> to vector<4x16x4xbf16>
    %c0_20 = arith.constant 0 : index
    %c1_21 = arith.constant 1 : index
    %c2_22 = arith.constant 2 : index
    %c0_23 = arith.constant 0 : index
    %13 = vector.load %arg1[%c0_20, %c1_21, %c2_22, %c0_23] : memref<1x18x18x4xbf16, #tpu.memory_space<vmem>>, vector<1x4x16x4xbf16>
    %14 = vector.shape_cast %13 : vector<1x4x16x4xbf16> to vector<4x16x4xbf16>
    %c0_24 = arith.constant 0 : index
    %c2_25 = arith.constant 2 : index
    %c0_26 = arith.constant 0 : index
    %c0_27 = arith.constant 0 : index
    %15 = vector.load %arg1[%c0_24, %c2_25, %c0_26, %c0_27] : memref<1x18x18x4xbf16, #tpu.memory_space<vmem>>, vector<1x4x16x4xbf16>
    %16 = vector.shape_cast %15 : vector<1x4x16x4xbf16> to vector<4x16x4xbf16>
    %c0_28 = arith.constant 0 : index
    %c2_29 = arith.constant 2 : index
    %c1_30 = arith.constant 1 : index
    %c0_31 = arith.constant 0 : index
    %17 = vector.load %arg1[%c0_28, %c2_29, %c1_30, %c0_31] : memref<1x18x18x4xbf16, #tpu.memory_space<vmem>>, vector<1x4x16x4xbf16>
    %18 = vector.shape_cast %17 : vector<1x4x16x4xbf16> to vector<4x16x4xbf16>
    %c0_32 = arith.constant 0 : index
    %c2_33 = arith.constant 2 : index
    %c2_34 = arith.constant 2 : index
    %c0_35 = arith.constant 0 : index
    %19 = vector.load %arg1[%c0_32, %c2_33, %c2_34, %c0_35] : memref<1x18x18x4xbf16, #tpu.memory_space<vmem>>, vector<1x4x16x4xbf16>
    %20 = vector.shape_cast %19 : vector<1x4x16x4xbf16> to vector<4x16x4xbf16>
    %cst_36 = arith.constant 0.000000e+00 : bf16
    %21 = vector.broadcast %cst_36 : bf16 to vector<4x16x4xbf16>
    %22 = tpu.concatenate %4, %6, %8, %10, %12, %14, %16, %18, %20, %21 in 2 : vector<4x16x4xbf16>, vector<4x16x4xbf16>, vector<4x16x4xbf16>, vector<4x16x4xbf16>, vector<4x16x4xbf16>, vector<4x16x4xbf16>, vector<4x16x4xbf16>, vector<4x16x4xbf16>, vector<4x16x4xbf16>, vector<4x16x4xbf16> -> vector<4x16x40xbf16>
    %23 = arith.extf %22 : vector<4x16x40xbf16> to vector<4x16x40xf32>
    %24 = vector.shape_cast %23 : vector<4x16x40xf32> to vector<64x40xf32>
    %25 = arith.truncf %24 : vector<64x40xf32> to vector<64x40xbf16>
    %c0_37 = arith.constant 0 : index
    %c0_38 = arith.constant 0 : index
    %26 = vector.load %arg2[%c0_37, %c0_38] : memref<40x128xbf16, #tpu.memory_space<vmem>>, vector<40x128xbf16>
    %cst_39 = arith.constant dense<0.000000e+00> : vector<64x128xf32>
    %27 = tpu.matmul %25, %26, %cst_39 {dimension_numbers = #tpu.dot_dimension_numbers<[1], [0], [0], [1], [0, 0, 1, 1], [], []>} : vector<64x40xbf16>, vector<40x128xbf16>, vector<64x128xf32> -> vector<64x128xf32>
    %28 = vector.broadcast %1 : vector<1x128xf32> to vector<64x128xf32>
    %29 = arith.addf %27, %28 : vector<64x128xf32>
    %cst_40 = arith.constant 0.000000e+00 : f32
    %30 = vector.broadcast %cst_40 : f32 to vector<64x128xf32>
    %31 = arith.maximumf %29, %30 : vector<64x128xf32>
    %32 = arith.truncf %31 : vector<64x128xf32> to vector<64x128xbf16>
    %cst_41 = arith.constant dense<0.000000e+00> : vector<1x128xf32>
    %33 = tpu.matmul %0, %32, %cst_41 {dimension_numbers = #tpu.dot_dimension_numbers<[1], [0], [0], [1], [0, 0, 1, 1], [], []>} : vector<1x64xbf16>, vector<64x128xbf16>, vector<1x128xf32> -> vector<1x128xf32>
    %34 = arith.addf %2, %33 : vector<1x128xf32>
    %c0_42 = arith.constant 0 : index
    %c4 = arith.constant 4 : index
    %c0_43 = arith.constant 0 : index
    %c0_44 = arith.constant 0 : index
    %35 = vector.load %arg1[%c0_42, %c4, %c0_43, %c0_44] : memref<1x18x18x4xbf16, #tpu.memory_space<vmem>>, vector<1x4x16x4xbf16>
    %36 = vector.shape_cast %35 : vector<1x4x16x4xbf16> to vector<4x16x4xbf16>
    %c0_45 = arith.constant 0 : index
    %c4_46 = arith.constant 4 : index
    %c1_47 = arith.constant 1 : index
    %c0_48 = arith.constant 0 : index
    %37 = vector.load %arg1[%c0_45, %c4_46, %c1_47, %c0_48] : memref<1x18x18x4xbf16, #tpu.memory_space<vmem>>, vector<1x4x16x4xbf16>
    %38 = vector.shape_cast %37 : vector<1x4x16x4xbf16> to vector<4x16x4xbf16>
    %c0_49 = arith.constant 0 : index
    %c4_50 = arith.constant 4 : index
    %c2_51 = arith.constant 2 : index
    %c0_52 = arith.constant 0 : index
    %39 = vector.load %arg1[%c0_49, %c4_50, %c2_51, %c0_52] : memref<1x18x18x4xbf16, #tpu.memory_space<vmem>>, vector<1x4x16x4xbf16>
    %40 = vector.shape_cast %39 : vector<1x4x16x4xbf16> to vector<4x16x4xbf16>
    %c0_53 = arith.constant 0 : index
    %c5 = arith.constant 5 : index
    %c0_54 = arith.constant 0 : index
    %c0_55 = arith.constant 0 : index
    %41 = vector.load %arg1[%c0_53, %c5, %c0_54, %c0_55] : memref<1x18x18x4xbf16, #tpu.memory_space<vmem>>, vector<1x4x16x4xbf16>
    %42 = vector.shape_cast %41 : vector<1x4x16x4xbf16> to vector<4x16x4xbf16>
    %c0_56 = arith.constant 0 : index
    %c5_57 = arith.constant 5 : index
    %c1_58 = arith.constant 1 : index
    %c0_59 = arith.constant 0 : index
    %43 = vector.load %arg1[%c0_56, %c5_57, %c1_58, %c0_59] : memref<1x18x18x4xbf16, #tpu.memory_space<vmem>>, vector<1x4x16x4xbf16>
    %44 = vector.shape_cast %43 : vector<1x4x16x4xbf16> to vector<4x16x4xbf16>
    %c0_60 = arith.constant 0 : index
    %c5_61 = arith.constant 5 : index
    %c2_62 = arith.constant 2 : index
    %c0_63 = arith.constant 0 : index
    %45 = vector.load %arg1[%c0_60, %c5_61, %c2_62, %c0_63] : memref<1x18x18x4xbf16, #tpu.memory_space<vmem>>, vector<1x4x16x4xbf16>
    %46 = vector.shape_cast %45 : vector<1x4x16x4xbf16> to vector<4x16x4xbf16>
    %c0_64 = arith.constant 0 : index
    %c6 = arith.constant 6 : index
    %c0_65 = arith.constant 0 : index
    %c0_66 = arith.constant 0 : index
    %47 = vector.load %arg1[%c0_64, %c6, %c0_65, %c0_66] : memref<1x18x18x4xbf16, #tpu.memory_space<vmem>>, vector<1x4x16x4xbf16>
    %48 = vector.shape_cast %47 : vector<1x4x16x4xbf16> to vector<4x16x4xbf16>
    %c0_67 = arith.constant 0 : index
    %c6_68 = arith.constant 6 : index
    %c1_69 = arith.constant 1 : index
    %c0_70 = arith.constant 0 : index
    %49 = vector.load %arg1[%c0_67, %c6_68, %c1_69, %c0_70] : memref<1x18x18x4xbf16, #tpu.memory_space<vmem>>, vector<1x4x16x4xbf16>
    %50 = vector.shape_cast %49 : vector<1x4x16x4xbf16> to vector<4x16x4xbf16>
    %c0_71 = arith.constant 0 : index
    %c6_72 = arith.constant 6 : index
    %c2_73 = arith.constant 2 : index
    %c0_74 = arith.constant 0 : index
    %51 = vector.load %arg1[%c0_71, %c6_72, %c2_73, %c0_74] : memref<1x18x18x4xbf16, #tpu.memory_space<vmem>>, vector<1x4x16x4xbf16>
    %52 = vector.shape_cast %51 : vector<1x4x16x4xbf16> to vector<4x16x4xbf16>
    %cst_75 = arith.constant 0.000000e+00 : bf16
    %53 = vector.broadcast %cst_75 : bf16 to vector<4x16x4xbf16>
    %54 = tpu.concatenate %36, %38, %40, %42, %44, %46, %48, %50, %52, %53 in 2 : vector<4x16x4xbf16>, vector<4x16x4xbf16>, vector<4x16x4xbf16>, vector<4x16x4xbf16>, vector<4x16x4xbf16>, vector<4x16x4xbf16>, vector<4x16x4xbf16>, vector<4x16x4xbf16>, vector<4x16x4xbf16>, vector<4x16x4xbf16> -> vector<4x16x40xbf16>
    %55 = arith.extf %54 : vector<4x16x40xbf16> to vector<4x16x40xf32>
    %56 = vector.shape_cast %55 : vector<4x16x40xf32> to vector<64x40xf32>
    %57 = arith.truncf %56 : vector<64x40xf32> to vector<64x40xbf16>
    %c0_76 = arith.constant 0 : index
    %c0_77 = arith.constant 0 : index
    %58 = vector.load %arg2[%c0_76, %c0_77] : memref<40x128xbf16, #tpu.memory_space<vmem>>, vector<40x128xbf16>
    %cst_78 = arith.constant dense<0.000000e+00> : vector<64x128xf32>
    %59 = tpu.matmul %57, %58, %cst_78 {dimension_numbers = #tpu.dot_dimension_numbers<[1], [0], [0], [1], [0, 0, 1, 1], [], []>} : vector<64x40xbf16>, vector<40x128xbf16>, vector<64x128xf32> -> vector<64x128xf32>
    %60 = vector.broadcast %1 : vector<1x128xf32> to vector<64x128xf32>
    %61 = arith.addf %59, %60 : vector<64x128xf32>
    %cst_79 = arith.constant 0.000000e+00 : f32
    %62 = vector.broadcast %cst_79 : f32 to vector<64x128xf32>
    %63 = arith.maximumf %61, %62 : vector<64x128xf32>
    %64 = arith.truncf %63 : vector<64x128xf32> to vector<64x128xbf16>
    %cst_80 = arith.constant dense<0.000000e+00> : vector<1x128xf32>
    %65 = tpu.matmul %0, %64, %cst_80 {dimension_numbers = #tpu.dot_dimension_numbers<[1], [0], [0], [1], [0, 0, 1, 1], [], []>} : vector<1x64xbf16>, vector<64x128xbf16>, vector<1x128xf32> -> vector<1x128xf32>
    %66 = arith.addf %34, %65 : vector<1x128xf32>
    %c0_81 = arith.constant 0 : index
    %c8 = arith.constant 8 : index
    %c0_82 = arith.constant 0 : index
    %c0_83 = arith.constant 0 : index
    %67 = vector.load %arg1[%c0_81, %c8, %c0_82, %c0_83] : memref<1x18x18x4xbf16, #tpu.memory_space<vmem>>, vector<1x4x16x4xbf16>
    %68 = vector.shape_cast %67 : vector<1x4x16x4xbf16> to vector<4x16x4xbf16>
    %c0_84 = arith.constant 0 : index
    %c8_85 = arith.constant 8 : index
    %c1_86 = arith.constant 1 : index
    %c0_87 = arith.constant 0 : index
    %69 = vector.load %arg1[%c0_84, %c8_85, %c1_86, %c0_87] : memref<1x18x18x4xbf16, #tpu.memory_space<vmem>>, vector<1x4x16x4xbf16>
    %70 = vector.shape_cast %69 : vector<1x4x16x4xbf16> to vector<4x16x4xbf16>
    %c0_88 = arith.constant 0 : index
    %c8_89 = arith.constant 8 : index
    %c2_90 = arith.constant 2 : index
    %c0_91 = arith.constant 0 : index
    %71 = vector.load %arg1[%c0_88, %c8_89, %c2_90, %c0_91] : memref<1x18x18x4xbf16, #tpu.memory_space<vmem>>, vector<1x4x16x4xbf16>
    %72 = vector.shape_cast %71 : vector<1x4x16x4xbf16> to vector<4x16x4xbf16>
    %c0_92 = arith.constant 0 : index
    %c9 = arith.constant 9 : index
    %c0_93 = arith.constant 0 : index
    %c0_94 = arith.constant 0 : index
    %73 = vector.load %arg1[%c0_92, %c9, %c0_93, %c0_94] : memref<1x18x18x4xbf16, #tpu.memory_space<vmem>>, vector<1x4x16x4xbf16>
    %74 = vector.shape_cast %73 : vector<1x4x16x4xbf16> to vector<4x16x4xbf16>
    %c0_95 = arith.constant 0 : index
    %c9_96 = arith.constant 9 : index
    %c1_97 = arith.constant 1 : index
    %c0_98 = arith.constant 0 : index
    %75 = vector.load %arg1[%c0_95, %c9_96, %c1_97, %c0_98] : memref<1x18x18x4xbf16, #tpu.memory_space<vmem>>, vector<1x4x16x4xbf16>
    %76 = vector.shape_cast %75 : vector<1x4x16x4xbf16> to vector<4x16x4xbf16>
    %c0_99 = arith.constant 0 : index
    %c9_100 = arith.constant 9 : index
    %c2_101 = arith.constant 2 : index
    %c0_102 = arith.constant 0 : index
    %77 = vector.load %arg1[%c0_99, %c9_100, %c2_101, %c0_102] : memref<1x18x18x4xbf16, #tpu.memory_space<vmem>>, vector<1x4x16x4xbf16>
    %78 = vector.shape_cast %77 : vector<1x4x16x4xbf16> to vector<4x16x4xbf16>
    %c0_103 = arith.constant 0 : index
    %c10 = arith.constant 10 : index
    %c0_104 = arith.constant 0 : index
    %c0_105 = arith.constant 0 : index
    %79 = vector.load %arg1[%c0_103, %c10, %c0_104, %c0_105] : memref<1x18x18x4xbf16, #tpu.memory_space<vmem>>, vector<1x4x16x4xbf16>
    %80 = vector.shape_cast %79 : vector<1x4x16x4xbf16> to vector<4x16x4xbf16>
    %c0_106 = arith.constant 0 : index
    %c10_107 = arith.constant 10 : index
    %c1_108 = arith.constant 1 : index
    %c0_109 = arith.constant 0 : index
    %81 = vector.load %arg1[%c0_106, %c10_107, %c1_108, %c0_109] : memref<1x18x18x4xbf16, #tpu.memory_space<vmem>>, vector<1x4x16x4xbf16>
    %82 = vector.shape_cast %81 : vector<1x4x16x4xbf16> to vector<4x16x4xbf16>
    %c0_110 = arith.constant 0 : index
    %c10_111 = arith.constant 10 : index
    %c2_112 = arith.constant 2 : index
    %c0_113 = arith.constant 0 : index
    %83 = vector.load %arg1[%c0_110, %c10_111, %c2_112, %c0_113] : memref<1x18x18x4xbf16, #tpu.memory_space<vmem>>, vector<1x4x16x4xbf16>
    %84 = vector.shape_cast %83 : vector<1x4x16x4xbf16> to vector<4x16x4xbf16>
    %cst_114 = arith.constant 0.000000e+00 : bf16
    %85 = vector.broadcast %cst_114 : bf16 to vector<4x16x4xbf16>
    %86 = tpu.concatenate %68, %70, %72, %74, %76, %78, %80, %82, %84, %85 in 2 : vector<4x16x4xbf16>, vector<4x16x4xbf16>, vector<4x16x4xbf16>, vector<4x16x4xbf16>, vector<4x16x4xbf16>, vector<4x16x4xbf16>, vector<4x16x4xbf16>, vector<4x16x4xbf16>, vector<4x16x4xbf16>, vector<4x16x4xbf16> -> vector<4x16x40xbf16>
    %87 = arith.extf %86 : vector<4x16x40xbf16> to vector<4x16x40xf32>
    %88 = vector.shape_cast %87 : vector<4x16x40xf32> to vector<64x40xf32>
    %89 = arith.truncf %88 : vector<64x40xf32> to vector<64x40xbf16>
    %c0_115 = arith.constant 0 : index
    %c0_116 = arith.constant 0 : index
    %90 = vector.load %arg2[%c0_115, %c0_116] : memref<40x128xbf16, #tpu.memory_space<vmem>>, vector<40x128xbf16>
    %cst_117 = arith.constant dense<0.000000e+00> : vector<64x128xf32>
    %91 = tpu.matmul %89, %90, %cst_117 {dimension_numbers = #tpu.dot_dimension_numbers<[1], [0], [0], [1], [0, 0, 1, 1], [], []>} : vector<64x40xbf16>, vector<40x128xbf16>, vector<64x128xf32> -> vector<64x128xf32>
    %92 = vector.broadcast %1 : vector<1x128xf32> to vector<64x128xf32>
    %93 = arith.addf %91, %92 : vector<64x128xf32>
    %cst_118 = arith.constant 0.000000e+00 : f32
    %94 = vector.broadcast %cst_118 : f32 to vector<64x128xf32>
    %95 = arith.maximumf %93, %94 : vector<64x128xf32>
    %96 = arith.truncf %95 : vector<64x128xf32> to vector<64x128xbf16>
    %cst_119 = arith.constant dense<0.000000e+00> : vector<1x128xf32>
    %97 = tpu.matmul %0, %96, %cst_119 {dimension_numbers = #tpu.dot_dimension_numbers<[1], [0], [0], [1], [0, 0, 1, 1], [], []>} : vector<1x64xbf16>, vector<64x128xbf16>, vector<1x128xf32> -> vector<1x128xf32>
    %98 = arith.addf %66, %97 : vector<1x128xf32>
    %c0_120 = arith.constant 0 : index
    %c12 = arith.constant 12 : index
    %c0_121 = arith.constant 0 : index
    %c0_122 = arith.constant 0 : index
    %99 = vector.load %arg1[%c0_120, %c12, %c0_121, %c0_122] : memref<1x18x18x4xbf16, #tpu.memory_space<vmem>>, vector<1x4x16x4xbf16>
    %100 = vector.shape_cast %99 : vector<1x4x16x4xbf16> to vector<4x16x4xbf16>
    %c0_123 = arith.constant 0 : index
    %c12_124 = arith.constant 12 : index
    %c1_125 = arith.constant 1 : index
    %c0_126 = arith.constant 0 : index
    %101 = vector.load %arg1[%c0_123, %c12_124, %c1_125, %c0_126] : memref<1x18x18x4xbf16, #tpu.memory_space<vmem>>, vector<1x4x16x4xbf16>
    %102 = vector.shape_cast %101 : vector<1x4x16x4xbf16> to vector<4x16x4xbf16>
    %c0_127 = arith.constant 0 : index
    %c12_128 = arith.constant 12 : index
    %c2_129 = arith.constant 2 : index
    %c0_130 = arith.constant 0 : index
    %103 = vector.load %arg1[%c0_127, %c12_128, %c2_129, %c0_130] : memref<1x18x18x4xbf16, #tpu.memory_space<vmem>>, vector<1x4x16x4xbf16>
    %104 = vector.shape_cast %103 : vector<1x4x16x4xbf16> to vector<4x16x4xbf16>
    %c0_131 = arith.constant 0 : index
    %c13 = arith.constant 13 : index
    %c0_132 = arith.constant 0 : index
    %c0_133 = arith.constant 0 : index
    %105 = vector.load %arg1[%c0_131, %c13, %c0_132, %c0_133] : memref<1x18x18x4xbf16, #tpu.memory_space<vmem>>, vector<1x4x16x4xbf16>
    %106 = vector.shape_cast %105 : vector<1x4x16x4xbf16> to vector<4x16x4xbf16>
    %c0_134 = arith.constant 0 : index
    %c13_135 = arith.constant 13 : index
    %c1_136 = arith.constant 1 : index
    %c0_137 = arith.constant 0 : index
    %107 = vector.load %arg1[%c0_134, %c13_135, %c1_136, %c0_137] : memref<1x18x18x4xbf16, #tpu.memory_space<vmem>>, vector<1x4x16x4xbf16>
    %108 = vector.shape_cast %107 : vector<1x4x16x4xbf16> to vector<4x16x4xbf16>
    %c0_138 = arith.constant 0 : index
    %c13_139 = arith.constant 13 : index
    %c2_140 = arith.constant 2 : index
    %c0_141 = arith.constant 0 : index
    %109 = vector.load %arg1[%c0_138, %c13_139, %c2_140, %c0_141] : memref<1x18x18x4xbf16, #tpu.memory_space<vmem>>, vector<1x4x16x4xbf16>
    %110 = vector.shape_cast %109 : vector<1x4x16x4xbf16> to vector<4x16x4xbf16>
    %c0_142 = arith.constant 0 : index
    %c14 = arith.constant 14 : index
    %c0_143 = arith.constant 0 : index
    %c0_144 = arith.constant 0 : index
    %111 = vector.load %arg1[%c0_142, %c14, %c0_143, %c0_144] : memref<1x18x18x4xbf16, #tpu.memory_space<vmem>>, vector<1x4x16x4xbf16>
    %112 = vector.shape_cast %111 : vector<1x4x16x4xbf16> to vector<4x16x4xbf16>
    %c0_145 = arith.constant 0 : index
    %c14_146 = arith.constant 14 : index
    %c1_147 = arith.constant 1 : index
    %c0_148 = arith.constant 0 : index
    %113 = vector.load %arg1[%c0_145, %c14_146, %c1_147, %c0_148] : memref<1x18x18x4xbf16, #tpu.memory_space<vmem>>, vector<1x4x16x4xbf16>
    %114 = vector.shape_cast %113 : vector<1x4x16x4xbf16> to vector<4x16x4xbf16>
    %c0_149 = arith.constant 0 : index
    %c14_150 = arith.constant 14 : index
    %c2_151 = arith.constant 2 : index
    %c0_152 = arith.constant 0 : index
    %115 = vector.load %arg1[%c0_149, %c14_150, %c2_151, %c0_152] : memref<1x18x18x4xbf16, #tpu.memory_space<vmem>>, vector<1x4x16x4xbf16>
    %116 = vector.shape_cast %115 : vector<1x4x16x4xbf16> to vector<4x16x4xbf16>
    %cst_153 = arith.constant 0.000000e+00 : bf16
    %117 = vector.broadcast %cst_153 : bf16 to vector<4x16x4xbf16>
    %118 = tpu.concatenate %100, %102, %104, %106, %108, %110, %112, %114, %116, %117 in 2 : vector<4x16x4xbf16>, vector<4x16x4xbf16>, vector<4x16x4xbf16>, vector<4x16x4xbf16>, vector<4x16x4xbf16>, vector<4x16x4xbf16>, vector<4x16x4xbf16>, vector<4x16x4xbf16>, vector<4x16x4xbf16>, vector<4x16x4xbf16> -> vector<4x16x40xbf16>
    %119 = arith.extf %118 : vector<4x16x40xbf16> to vector<4x16x40xf32>
    %120 = vector.shape_cast %119 : vector<4x16x40xf32> to vector<64x40xf32>
    %121 = arith.truncf %120 : vector<64x40xf32> to vector<64x40xbf16>
    %c0_154 = arith.constant 0 : index
    %c0_155 = arith.constant 0 : index
    %122 = vector.load %arg2[%c0_154, %c0_155] : memref<40x128xbf16, #tpu.memory_space<vmem>>, vector<40x128xbf16>
    %cst_156 = arith.constant dense<0.000000e+00> : vector<64x128xf32>
    %123 = tpu.matmul %121, %122, %cst_156 {dimension_numbers = #tpu.dot_dimension_numbers<[1], [0], [0], [1], [0, 0, 1, 1], [], []>} : vector<64x40xbf16>, vector<40x128xbf16>, vector<64x128xf32> -> vector<64x128xf32>
    %124 = vector.broadcast %1 : vector<1x128xf32> to vector<64x128xf32>
    %125 = arith.addf %123, %124 : vector<64x128xf32>
    %cst_157 = arith.constant 0.000000e+00 : f32
    %126 = vector.broadcast %cst_157 : f32 to vector<64x128xf32>
    %127 = arith.maximumf %125, %126 : vector<64x128xf32>
    %128 = arith.truncf %127 : vector<64x128xf32> to vector<64x128xbf16>
    %cst_158 = arith.constant dense<0.000000e+00> : vector<1x128xf32>
    %129 = tpu.matmul %0, %128, %cst_158 {dimension_numbers = #tpu.dot_dimension_numbers<[1], [0], [0], [1], [0, 0, 1, 1], [], []>} : vector<1x64xbf16>, vector<64x128xbf16>, vector<1x128xf32> -> vector<1x128xf32>
    %130 = arith.addf %98, %129 : vector<1x128xf32>
    %cst_159 = arith.constant 3.906250e-03 : f32
    %131 = vector.broadcast %cst_159 : f32 to vector<1x128xf32>
    %132 = arith.mulf %130, %131 : vector<1x128xf32>
    %133 = arith.truncf %132 : vector<1x128xf32> to vector<1x128xbf16>
    %c0_160 = arith.constant 0 : index
    %c0_161 = arith.constant 0 : index
    %134 = vector.load %arg4[%c0_160, %c0_161] : memref<128x128xbf16, #tpu.memory_space<vmem>>, vector<128x128xbf16>
    %cst_162 = arith.constant dense<0.000000e+00> : vector<1x128xf32>
    %135 = tpu.matmul %133, %134, %cst_162 {dimension_numbers = #tpu.dot_dimension_numbers<[1], [0], [0], [1], [0, 0, 1, 1], [], []>} : vector<1x128xbf16>, vector<128x128xbf16>, vector<1x128xf32> -> vector<1x128xf32>
    %c0_163 = arith.constant 0 : index
    %c0_164 = arith.constant 0 : index
    %136 = vector.load %arg5[%c0_163, %c0_164] : memref<1x128xf32, #tpu.memory_space<vmem>>, vector<1x128xf32>
    %137 = arith.addf %135, %136 : vector<1x128xf32>
    %138 = math.absf %137 : vector<1x128xf32>
    %cst_165 = arith.constant 0.000000e+00 : f32
    %139 = vector.broadcast %cst_165 : f32 to vector<1x128xf32>
    %140 = arith.subf %139, %138 : vector<1x128xf32>
    %141 = math.exp %140 : vector<1x128xf32>
    %cst_166 = arith.constant 1.000000e+00 : f32
    %142 = vector.broadcast %cst_166 : f32 to vector<1x128xf32>
    %143 = arith.addf %142, %141 : vector<1x128xf32>
    %cst_167 = arith.constant 1.000000e+00 : f32
    %144 = vector.broadcast %cst_167 : f32 to vector<1x128xf32>
    %145 = arith.divf %144, %143 : vector<1x128xf32>
    %cst_168 = arith.constant 0.000000e+00 : f32
    %146 = vector.broadcast %cst_168 : f32 to vector<1x128xf32>
    %147 = arith.cmpf oge, %137, %146 : vector<1x128xf32>
    %148 = arith.mulf %141, %145 : vector<1x128xf32>
    %149 = arith.select %147, %145, %148 : vector<1x128xi1>, vector<1x128xf32>
    %c0_169 = arith.constant 0 : index
    %c0_170 = arith.constant 0 : index
    %c0_171 = arith.constant 0 : index
    %150 = vector.load %arg6[%c0_169, %c0_170, %c0_171] : memref<1x1x128xf32, #tpu.memory_space<vmem>>, vector<1x1x128xf32>
    %151 = vector.shape_cast %150 : vector<1x1x128xf32> to vector<1x128xf32>
    %152 = vector.shape_cast %149 : vector<1x128xf32> to vector<1x1x128xf32>
    tpu.vector_store %arg6[%c0_169, %c0_170, %c0_171], %152 {strides = array<i32>} : memref<1x1x128xf32, #tpu.memory_space<vmem>>, vector<1x1x128xf32>,
    return
  }
  func.func @transform_0(%arg0: i32) -> (i32, i32, i32, i32) {
    %c0_i32 = arith.constant 0 : i32
    %c0_i32_0 = arith.constant 0 : i32
    %c0_i32_1 = arith.constant 0 : i32
    %c0_i32_2 = arith.constant 0 : i32
    return %arg0, %c0_i32, %c0_i32_0, %c0_i32_1 : i32, i32, i32, i32
  }
  func.func @transform_1(%arg0: i32) -> (i32, i32) {
    %c0_i32 = arith.constant 0 : i32
    %c0_i32_0 = arith.constant 0 : i32
    %c0_i32_1 = arith.constant 0 : i32
    return %c0_i32, %c0_i32_0 : i32, i32
  }
  func.func @transform_2(%arg0: i32) -> (i32, i32) {
    %c0_i32 = arith.constant 0 : i32
    %c0_i32_0 = arith.constant 0 : i32
    %c0_i32_1 = arith.constant 0 : i32
    return %c0_i32, %c0_i32_0 : i32, i32
  }
  func.func @transform_3(%arg0: i32) -> (i32, i32) {
    %c0_i32 = arith.constant 0 : i32
    %c0_i32_0 = arith.constant 0 : i32
    %c0_i32_1 = arith.constant 0 : i32
    return %c0_i32, %c0_i32_0 : i32, i32
  }
  func.func @transform_4(%arg0: i32) -> (i32, i32) {
    %c0_i32 = arith.constant 0 : i32
    %c0_i32_0 = arith.constant 0 : i32
    %c0_i32_1 = arith.constant 0 : i32
    return %c0_i32, %c0_i32_0 : i32, i32
  }
  func.func @transform_5(%arg0: i32) -> (i32, i32, i32) {
    %c0_i32 = arith.constant 0 : i32
    %c0_i32_0 = arith.constant 0 : i32
    %c0_i32_1 = arith.constant 0 : i32
    return %arg0, %c0_i32, %c0_i32_0 : i32, i32, i32
  }
}

</mosaic_0001>

<llo_original>
// kernel: flag_classifier_forward.1
$region0: #{flag_classifier_forward.1}
  #allocation0 [shape = 'u32[]', space=smem, size = 0x4, offset = 0x4, fixed_abs, tag = 'smem constant byte address 0x4 - core index']
  #allocation1 [shape = 'u32[144,128]{1,0:T(1,128)}', space=vmem, size = 0x12000, scoped, tag = 'internal scratch']
  %s0 = inlined_call_operand.vmem [shape: bf16[2,18,18,4], index: 0, kind: input, shape index: {}]
  %s1 = inlined_call_operand.vmem [shape: bf16[40,128], index: 1, kind: input, shape index: {}]
  %s2 = inlined_call_operand.vmem [shape: f32[1,128], index: 2, kind: input, shape index: {}]
  %s3 = inlined_call_operand.vmem [shape: bf16[128,128], index: 3, kind: input, shape index: {}]
  %s4 = inlined_call_operand.vmem [shape: f32[1,128], index: 4, kind: input, shape index: {}]
  %s5 = inlined_call_operand.hbm [shape: f32[2,1,128], index: 5, kind: output, shape index: {}]
  %s6 = sld [smem:[#allocation0]]
  $region53: #{flag_classifier_forward.1} parent=0
    _
  %s8 = ssub.s32 1, %s6
  %s9 = scalar_select 0, %s8, %s6
  $region1: #{flag_classifier_forward.1} parent=0
    #allocation2 [shape = 'u8[1024]{0}', space=vmem, size = 0x400, scoped, tag = 'output window, operand 0']
    #allocation3 [shape = 's32[2]{0}', space=sflag, size = 0x8, scoped, tag = 'scoped memory for flag_classifier_forward.1']
    %10 = vsyncpa [#allocation3], 0
    %s11 = scalar_lea.sflag [#allocation3], 1
    %12 = vsyncpa %s11, 0
    loop: start=0, step=1, limit=4
    $region2: #{flag_classifier_forward.1} parent=1 // loop_pre_header
      _
    $region3: #{flag_classifier_forward.1} parent=1 // loop_header
      %s14 = sphi 0, %s18
      %p15 = scmp.ge.s32.totalorder %s14, 4
      %s24 = sphi 0, %s26
      %s27 = sphi 0, %s24
      %s28 = sphi 0, %s27
      %s44 = sphi 0, %s28
      %s48 = sphi 0, %s48
      %s50 = sphi 0, %s48
      %s51 = sphi 0, %s50
      %s65 = sphi 0, %s51
      %s69 = sphi 0, %s69
      %s71 = sphi 0, %s69
      %s72 = sphi 0, %s71
      %s86 = sphi 0, %s72
      %s90 = sphi 0, %s90
      %s92 = sphi 0, %s90
      %s93 = sphi 0, %s92
      %s107 = sphi 0, %s93
      %s111 = sphi 0, %s111
      %s113 = sphi 0, %s111
      %s114 = sphi 0, %s113
      %s128 = sphi 0, %s114
      %s134 = sphi 0, %s136
      %s137 = sphi 0, %s134
      %s138 = sphi 0, %s137
      %s154 = sphi 0, %s138
    $region4: #{flag_classifier_forward.1} parent=1 // loop_header_branch
      %17 = sbr.rel (%p15) target = $region8
    $region5: #{flag_classifier_forward.1} parent=1 // loop_body
      %s19 = ssub.s32 %s14, 1
      %s20 = ssub.s32 %s14, 2
      %s21 = sadd.s32 %s14, 1
      %s22 = ssub.s32 %s14, %s21
      %p23 = scmp.eq.s32.totalorder %s22, 0
      %s25 = sadd.s32 %s24, 1
      %s26 = scalar_select %p23, %s24, %s25
      %p29 = pneg %p23
      %p30 = scmp.eq.s32.totalorder %s14, 1
      %p31 = por %p29, %p30
      %p32 = scmp.ne.s32.totalorder %s24, %s27
      %p33 = scmp.eq.s32.totalorder %s14, 0
      %p34 = por %p32, %p33
      %p35 = scmp.ne.s32.totalorder %s24, %s27
      %p36 = scmp.eq.s32.totalorder %s19, 1
      %p37 = por %p35, %p36
      %p38 = scmp.ne.s32.totalorder %s27, %s28
      %p39 = scmp.eq.s32.totalorder %s19, 0
      %p40 = por %p38, %p39
      %p41 = scmp.ne.s32.totalorder %s27, %s28
      %p42 = scmp.eq.s32.totalorder %s20, 1
      %p43 = por %p41, %p42
      %p45 = scmp.ne.s32.totalorder %s28, %s44
      %p46 = scmp.eq.s32.totalorder %s20, 0
      %p47 = por %p45, %p46
      %s49 = sadd.s32 %s48, 1
      %p52 = scmp.eq.s32.totalorder %s14, 1
      %p53 = scmp.ne.s32.totalorder %s48, %s50
      %p54 = scmp.eq.s32.totalorder %s14, 0
      %p55 = por %p53, %p54
      %p56 = scmp.ne.s32.totalorder %s48, %s50
      %p57 = scmp.eq.s32.totalorder %s19, 1
      %p58 = por %p56, %p57
      %p59 = scmp.ne.s32.totalorder %s50, %s51
      %p60 = scmp.eq.s32.totalorder %s19, 0
      %p61 = por %p59, %p60
      %p62 = scmp.ne.s32.totalorder %s50, %s51
      %p63 = scmp.eq.s32.totalorder %s20, 1
      %p64 = por %p62, %p63
      %p66 = scmp.ne.s32.totalorder %s51, %s65
      %p67 = scmp.eq.s32.totalorder %s20, 0
      %p68 = por %p66, %p67
      %s70 = sadd.s32 %s69, 1
      %p73 = scmp.eq.s32.totalorder %s14, 1
      %p74 = scmp.ne.s32.totalorder %s69, %s71
      %p75 = scmp.eq.s32.totalorder %s14, 0
      %p76 = por %p74, %p75
      %p77 = scmp.ne.s32.totalorder %s69, %s71
      %p78 = scmp.eq.s32.totalorder %s19, 1
      %p79 = por %p77, %p78
      %p80 = scmp.ne.s32.totalorder %s71, %s72
      %p81 = scmp.eq.s32.totalorder %s19, 0
      %p82 = por %p80, %p81
      %p83 = scmp.ne.s32.totalorder %s71, %s72
      %p84 = scmp.eq.s32.totalorder %s20, 1
      %p85 = por %p83, %p84
      %p87 = scmp.ne.s32.totalorder %s72, %s86
      %p88 = scmp.eq.s32.totalorder %s20, 0
      %p89 = por %p87, %p88
      %s91 = sadd.s32 %s90, 1
      %p94 = scmp.eq.s32.totalorder %s14, 1
      %p95 = scmp.ne.s32.totalorder %s90, %s92
      %p96 = scmp.eq.s32.totalorder %s14, 0
      %p97 = por %p95, %p96
      %p98 = scmp.ne.s32.totalorder %s90, %s92
      %p99 = scmp.eq.s32.totalorder %s19, 1
      %p100 = por %p98, %p99
      %p101 = scmp.ne.s32.totalorder %s92, %s93
      %p102 = scmp.eq.s32.totalorder %s19, 0
      %p103 = por %p101, %p102
      %p104 = scmp.ne.s32.totalorder %s92, %s93
      %p105 = scmp.eq.s32.totalorder %s20, 1
      %p106 = por %p104, %p105
      %p108 = scmp.ne.s32.totalorder %s93, %s107
      %p109 = scmp.eq.s32.totalorder %s20, 0
      %p110 = por %p108, %p109
      %s112 = sadd.s32 %s111, 1
      %p115 = scmp.eq.s32.totalorder %s14, 1
      %p116 = scmp.ne.s32.totalorder %s111, %s113
      %p117 = scmp.eq.s32.totalorder %s14, 0
      %p118 = por %p116, %p117
      %p119 = scmp.ne.s32.totalorder %s111, %s113
      %p120 = scmp.eq.s32.totalorder %s19, 1
      %p121 = por %p119, %p120
      %p122 = scmp.ne.s32.totalorder %s113, %s114
      %p123 = scmp.eq.s32.totalorder %s19, 0
      %p124 = por %p122, %p123
      %p125 = scmp.ne.s32.totalorder %s113, %s114
      %p126 = scmp.eq.s32.totalorder %s20, 1
      %p127 = por %p125, %p126
      %p129 = scmp.ne.s32.totalorder %s114, %s128
      %p130 = scmp.eq.s32.totalorder %s20, 0
      %p131 = por %p129, %p130
      %s132 = ssub.s32 %s14, %s21
      %p133 = scmp.eq.s32.totalorder %s132, 0
      %s135 = sadd.s32 %s134, 1
      %s136 = scalar_select %p133, %s134, %s135
      %p139 = pneg %p133
      %p140 = scmp.eq.s32.totalorder %s14, 1
      %p141 = por %p139, %p140
      %p142 = scmp.ne.s32.totalorder %s134, %s137
      %p143 = scmp.eq.s32.totalorder %s14, 0
      %p144 = por %p142, %p143
      %p145 = scmp.ne.s32.totalorder %s134, %s137
      %p146 = scmp.eq.s32.totalorder %s19, 1
      %p147 = por %p145, %p146
      %p148 = scmp.ne.s32.totalorder %s137, %s138
      %p149 = scmp.eq.s32.totalorder %s19, 0
      %p150 = por %p148, %p149
      %p151 = scmp.ne.s32.totalorder %s137, %s138
      %p152 = scmp.eq.s32.totalorder %s20, 1
      %p153 = por %p151, %p152
      %p155 = scmp.ne.s32.totalorder %s138, %s154
      %p156 = scmp.eq.s32.totalorder %s20, 0
      %p157 = por %p155, %p156
      %p158 = scmp.le.s32.totalorder 1, %s14
      %p159 = scmp.lt.s32.totalorder %s14, 3
      %p160 = pnand %p158, %p159
      %p161 = pneg %p160
      // Predicated region
      $region9: #{flag_classifier_forward.1} parent=5 // pred_check
        _
      $region10: #{flag_classifier_forward.1} parent=5 // pred_check_branch
        %163 = sbr.rel (%p160) target = $region12
      $region11: #{flag_classifier_forward.1} parent=5 // pred_region
        %s164 = ssub.s32 %s14, 1
        // Predicated region
        $region13: #{flag_classifier_forward.1} parent=11 // pred_check
          %p165 = pneg %p61
        $region14: #{flag_classifier_forward.1} parent=11 // pred_check_branch
          %167 = sbr.rel (%p165) target = $region16
        $region15: #{flag_classifier_forward.1} parent=11 // pred_region
          _
        $region16: #{flag_classifier_forward.1} parent=11 // pred_fallthru
          _
        // Predicated region
        $region17: #{flag_classifier_forward.1} parent=11 // pred_check
          %p168 = pneg %p82
        $region18: #{flag_classifier_forward.1} parent=11 // pred_check_branch
          %170 = sbr.rel (%p168) target = $region20
        $region19: #{flag_classifier_forward.1} parent=11 // pred_region
          _
        $region20: #{flag_classifier_forward.1} parent=11 // pred_fallthru
          _
        // Predicated region
        $region21: #{flag_classifier_forward.1} parent=11 // pred_check
          %p171 = pneg %p103
        $region22: #{flag_classifier_forward.1} parent=11 // pred_check_branch
          %173 = sbr.rel (%p171) target = $region24
        $region23: #{flag_classifier_forward.1} parent=11 // pred_region
          _
        $region24: #{flag_classifier_forward.1} parent=11 // pred_fallthru
          _
        // Predicated region
        $region25: #{flag_classifier_forward.1} parent=11 // pred_check
          %p174 = pneg %p124
        $region26: #{flag_classifier_forward.1} parent=11 // pred_check_branch
          %176 = sbr.rel (%p174) target = $region28
        $region27: #{flag_classifier_forward.1} parent=11 // pred_region
          _
        $region28: #{flag_classifier_forward.1} parent=11 // pred_fallthru
          _
      $region12: #{flag_classifier_forward.1} parent=5 // pred_fallthru
        _
      %p177 = scmp.lt.s32.totalorder %s14, 2
      // Predicated region
      $region29: #{flag_classifier_forward.1} parent=5 // pred_check
        %p178 = pneg %p177
      $region30: #{flag_classifier_forward.1} parent=5 // pred_check_branch
        %180 = sbr.rel (%p178) target = $region32
      $region31: #{flag_classifier_forward.1} parent=5 // pred_region
        // Predicated region
        $region33: #{flag_classifier_forward.1} parent=31 // pred_check
          %p181 = pneg %p34
        $region34: #{flag_classifier_forward.1} parent=31 // pred_check_branch
          %183 = sbr.rel (%p181) target = $region36
        $region35: #{flag_classifier_forward.1} parent=31 // pred_region
          %p184 = scmp.lt.s32.totalorder %s14, 1
          %s185 = scalar_select %p184, %s14, 1
          %s186 = smul.addr %s185, 54
          %s187 = smul.addr %s186, 4
          %s188 = scalar_lea.vmem %s0, %s187
        $region36: #{flag_classifier_forward.1} parent=31 // pred_fallthru
          _
      $region32: #{flag_classifier_forward.1} parent=5 // pred_fallthru
        _
      %p189 = scmp.le.s32.totalorder 1, %s14
      %p190 = scmp.lt.s32.totalorder %s14, 3
      %p191 = pnand %p189, %p190
      %p192 = pneg %p191
      // Predicated region
      $region37: #{flag_classifier_forward.1} parent=5 // pred_check
        _
      $region38: #{flag_classifier_forward.1} parent=5 // pred_check_branch
        %194 = sbr.rel (%p191) target = $region40
      $region39: #{flag_classifier_forward.1} parent=5 // pred_region
        %s195 = ssub.s32 %s14, 1
        %p196 = scmp.lt.s32.totalorder %s19, 1
        %s197 = scalar_select %p196, %s19, 1
        %s198 = smul.addr %s197, 54
        %s199 = smul.addr %s198, 4
        %s200 = scalar_lea.vmem %s0, %s199
        %p201 = pneg %p40
        %p202 = pneg %p37
        %p203 = pneg %p61
        %p204 = pneg %p58
        %p205 = pneg %p82
        %p206 = pneg %p79
        %p207 = pneg %p103
        %p208 = pneg %p100
        %p209 = pneg %p124
        %p210 = pneg %p121
        %p211 = pneg %p150
        %p212 = pneg %p147
        %s213 = sand.u32 %s137, 1
        %s214 = scalar_lea.sflag [#allocation3], %s213
        %s215 = sand.u32 %s137, 1
        %s216 = scalar_lea.vmem [#allocation2], %s215
        %p217 = scmp.lt.s32.totalorder %s19, 1
        %s218 = scalar_select %p217, %s19, 1
        %s219 = smul.addr %s218, 54
        %s220 = smul.addr %s219, 4
        %s221 = scalar_lea.vmem %s0, %s220
        %v224 = vld [vmem:[%s2] sm:$0x1]
        %v225 = vld [vmem:[%s221] sm:$0xf]
        %v226 = vld [vmem:[%s221 + $0x4] sm:$0xf]
        %v227 = vld [vmem:[%s221 + $0xc] sm:$0xf]
        %v228 = vld [vmem:[%s221 + $0x10] sm:$0xf]
        %v229 = vld [vmem:[%s221 + $0x18] sm:$0xf]
        %v230 = vld [vmem:[%s221 + $0x1c] sm:$0xf]
        %v231 = vld [vmem:[%s221 + $0x24] sm:$0xf]
        %v232 = vld [vmem:[%s221 + $0x28] sm:$0xf]
        %v233 = vld [vmem:[%s221 + $0x8] sm:$0x1]
        %v234 = vld [vmem:[%s221 + $0x14] sm:$0x1]
        %v235 = vld [vmem:[%s221 + $0x20] sm:$0x1]
        %v236 = vld [vmem:[%s221 + $0x2c] sm:$0x1]
        %v237 = vld [vmem:[%s221] sm:$0xe]
        %v238 = vld [vmem:[%s221 + $0xc] sm:$0xe]
        %v239 = vld [vmem:[%s221 + $0x18] sm:$0xe]
        %v240 = vld [vmem:[%s221 + $0x24] sm:$0xe]
        %s241 = scalar_lea.vmem %s221, 12
        %v242 = vld [vmem:[%s241] sm:$0xf]
        %v243 = vld [vmem:[%s241 + $0x4] sm:$0xf]
        %v244 = vld [vmem:[%s241 + $0xc] sm:$0xf]
        %v245 = vld [vmem:[%s241 + $0x10] sm:$0xf]
        %v246 = vld [vmem:[%s241 + $0x18] sm:$0xf]
        %v247 = vld [vmem:[%s241 + $0x1c] sm:$0xf]
        %v248 = vld [vmem:[%s241 + $0x24] sm:$0xf]
        %v249 = vld [vmem:[%s241 + $0x28] sm:$0xf]
        %v250 = vld [vmem:[%s241 + $0x8] sm:$0x1]
        %v251 = vld [vmem:[%s241 + $0x14] sm:$0x1]
        %v252 = vld [vmem:[%s241 + $0x20] sm:$0x1]
        %v253 = vld [vmem:[%s241 + $0x2c] sm:$0x1]
        %v254 = vld [vmem:[%s241] sm:$0xe]
        %v255 = vld [vmem:[%s241 + $0xc] sm:$0xe]
        %v256 = vld [vmem:[%s241 + $0x18] sm:$0xe]
        %v257 = vld [vmem:[%s241 + $0x24] sm:$0xe]
        %s258 = scalar_lea.vmem %s221, 24
        %v259 = vld [vmem:[%s258] sm:$0xf]
        %v260 = vld [vmem:[%s258 + $0x4] sm:$0xf]
        %v261 = vld [vmem:[%s258 + $0xc] sm:$0xf]
        %v262 = vld [vmem:[%s258 + $0x10] sm:$0xf]
        %v263 = vld [vmem:[%s258 + $0x18] sm:$0xf]
        %v264 = vld [vmem:[%s258 + $0x1c] sm:$0xf]
        %v265 = vld [vmem:[%s258 + $0x24] sm:$0xf]
        %v266 = vld [vmem:[%s258 + $0x28] sm:$0xf]
        %v267 = vld [vmem:[%s258 + $0x8] sm:$0x1]
        %v268 = vld [vmem:[%s258 + $0x14] sm:$0x1]
        %v269 = vld [vmem:[%s258 + $0x20] sm:$0x1]
        %v270 = vld [vmem:[%s258 + $0x2c] sm:$0x1]
        %v271 = vld [vmem:[%s258] sm:$0xe]
        %v272 = vld [vmem:[%s258 + $0xc] sm:$0xe]
        %v273 = vld [vmem:[%s258 + $0x18] sm:$0xe]
        %v274 = vld [vmem:[%s258 + $0x24] sm:$0xe]
        %v283 = vunpack.c.l.b16 %v225
        %v284 = vunpack.c.l.b16 %v226
        %v285 = vunpack.c.l.b16 %v227
        %v286 = vunpack.c.l.b16 %v228
        %v287 = vunpack.c.l.b16 %v229
        %v288 = vunpack.c.l.b16 %v230
        %v289 = vunpack.c.l.b16 %v231
        %v290 = vunpack.c.l.b16 %v232
        %v291 = vpack.c.b16 %v284, %v283
        %v292 = vpack.c.b16 %v286, %v285
        %v293 = vpack.c.b16 %v288, %v287
        %v294 = vpack.c.b16 %v290, %v289
        %v299 = vunpack.c.l.b16 %v233
        %v300 = vunpack.c.l.b16 %v234
        %v301 = vunpack.c.l.b16 %v235
        %v302 = vunpack.c.l.b16 %v236
        %v303 = vpack.c.b16 %v299, %v299
        %v304 = vpack.c.b16 %v300, %v300
        %v305 = vpack.c.b16 %v301, %v301
        %v306 = vpack.c.b16 %v302, %v302
        %vm307 = vsmask.f32 7424
        %v309 = vshrl.u32 %v291, 16
        %v311 = vshll.u32 %v291, 16
        %v313 = vrot.slane %v311, 1
        %v314 = vor.u32 %v309, %v313
        %v316 = vshll.u32 %v303, 16
        %v318 = vrot.slane %v316, 1
        %v319 = vsel %vm307, %v314, %v318
        %v321 = vshrl.u32 %v292, 16
        %v323 = vshll.u32 %v292, 16
        %v325 = vrot.slane %v323, 1
        %v326 = vor.u32 %v321, %v325
        %v328 = vshll.u32 %v304, 16
        %v330 = vrot.slane %v328, 1
        %v331 = vsel %vm307, %v326, %v330
        %v333 = vshrl.u32 %v293, 16
        %v335 = vshll.u32 %v293, 16
        %v337 = vrot.slane %v335, 1
        %v338 = vor.u32 %v333, %v337
        %v340 = vshll.u32 %v305, 16
        %v342 = vrot.slane %v340, 1
        %v343 = vsel %vm307, %v338, %v342
        %v345 = vshrl.u32 %v294, 16
        %v347 = vshll.u32 %v294, 16
        %v349 = vrot.slane %v347, 1
        %v350 = vor.u32 %v345, %v349
        %v352 = vshll.u32 %v306, 16
        %v354 = vrot.slane %v352, 1
        %v355 = vsel %vm307, %v350, %v354
        %356 = vrot.lane.b32.xlu0 %v319, 4
        %v357 = vpop.permute.xlu0 %356
        %358 = vrot.lane.b32.xlu0 %v331, 4
        %v359 = vpop.permute.xlu0 %358
        %360 = vrot.lane.b32.xlu0 %v343, 4
        %v361 = vpop.permute.xlu0 %360
        %362 = vrot.lane.b32.xlu0 %v355, 4
        %v363 = vpop.permute.xlu0 %362
        %v368 = vunpack.c.l.b16 %v237
        %v369 = vunpack.c.l.b16 %v238
        %v370 = vunpack.c.l.b16 %v239
        %v371 = vunpack.c.l.b16 %v240
        %v372 = vpack.c.b16 %v284, %v368
        %v373 = vpack.c.b16 %v286, %v369
        %v374 = vpack.c.b16 %v288, %v370
        %v375 = vpack.c.b16 %v290, %v371
        %vm376 = vcmask 1046528
        %v377 = vrot.slane %v372, 1
        %v378 = vrot.slane %v303, 1
        %v379 = vsel %vm376, %v377, %v378
        %v380 = vrot.slane %v373, 1
        %v381 = vrot.slane %v304, 1
        %v382 = vsel %vm376, %v380, %v381
        %v383 = vrot.slane %v374, 1
        %v384 = vrot.slane %v305, 1
        %v385 = vsel %vm376, %v383, %v384
        %v386 = vrot.slane %v375, 1
        %v387 = vrot.slane %v306, 1
        %v388 = vsel %vm376, %v386, %v387
        %389 = vrot.lane.b32.xlu0 %v379, 8
        %v390 = vpop.permute.xlu0 %389
        %391 = vrot.lane.b32.xlu0 %v382, 8
        %v392 = vpop.permute.xlu0 %391
        %393 = vrot.lane.b32.xlu0 %v385, 8
        %v394 = vpop.permute.xlu0 %393
        %395 = vrot.lane.b32.xlu0 %v388, 8
        %v396 = vpop.permute.xlu0 %395
        %v405 = vunpack.c.l.b16 %v242
        %v406 = vunpack.c.l.b16 %v243
        %v407 = vunpack.c.l.b16 %v244
        %v408 = vunpack.c.l.b16 %v245
        %v409 = vunpack.c.l.b16 %v246
        %v410 = vunpack.c.l.b16 %v247
        %v411 = vunpack.c.l.b16 %v248
        %v412 = vunpack.c.l.b16 %v249
        %v413 = vpack.c.b16 %v406, %v405
        %v414 = vpack.c.b16 %v408, %v407
        %v415 = vpack.c.b16 %v410, %v409
        %v416 = vpack.c.b16 %v412, %v411
        %417 = vrot.lane.b32.xlu0 %v413, 12
        %v418 = vpop.permute.xlu0 %417
        %419 = vrot.lane.b32.xlu0 %v414, 12
        %v420 = vpop.permute.xlu0 %419
        %421 = vrot.lane.b32.xlu0 %v415, 12
        %v422 = vpop.permute.xlu0 %421
        %423 = vrot.lane.b32.xlu0 %v416, 12
        %v424 = vpop.permute.xlu0 %423
        %v429 = vunpack.c.l.b16 %v250
        %v430 = vunpack.c.l.b16 %v251
        %v431 = vunpack.c.l.b16 %v252
        %v432 = vunpack.c.l.b16 %v253
        %v433 = vpack.c.b16 %v429, %v429
        %v434 = vpack.c.b16 %v430, %v430
        %v435 = vpack.c.b16 %v431, %v431
        %v436 = vpack.c.b16 %v432, %v432
        %v438 = vshrl.u32 %v413, 16
        %v440 = vshll.u32 %v413, 16
        %v442 = vrot.slane %v440, 1
        %v443 = vor.u32 %v438, %v442
        %v445 = vshll.u32 %v433, 16
        %v447 = vrot.slane %v445, 1
        %v448 = vsel %vm307, %v443, %v447
        %v450 = vshrl.u32 %v414, 16
        %v452 = vshll.u32 %v414, 16
        %v454 = vrot.slane %v452, 1
        %v455 = vor.u32 %v450, %v454
        %v457 = vshll.u32 %v434, 16
        %v459 = vrot.slane %v457, 1
        %v460 = vsel %vm307, %v455, %v459
        %v462 = vshrl.u32 %v415, 16
        %v464 = vshll.u32 %v415, 16
        %v466 = vrot.slane %v464, 1
        %v467 = vor.u32 %v462, %v466
        %v469 = vshll.u32 %v435, 16
        %v471 = vrot.slane %v469, 1
        %v472 = vsel %vm307, %v467, %v471
        %v474 = vshrl.u32 %v416, 16
        %v476 = vshll.u32 %v416, 16
        %v478 = vrot.slane %v476, 1
        %v479 = vor.u32 %v474, %v478
        %v481 = vshll.u32 %v436, 16
        %v483 = vrot.slane %v481, 1
        %v484 = vsel %vm307, %v479, %v483
        %485 = vrot.lane.b32.xlu0 %v448, 16
        %v486 = vpop.permute.xlu0 %485
        %487 = vrot.lane.b32.xlu0 %v460, 16
        %v488 = vpop.permute.xlu0 %487
        %489 = vrot.lane.b32.xlu0 %v472, 16
        %v490 = vpop.permute.xlu0 %489
        %491 = vrot.lane.b32.xlu0 %v484, 16
        %v492 = vpop.permute.xlu0 %491
        %v497 = vunpack.c.l.b16 %v254
        %v498 = vunpack.c.l.b16 %v255
        %v499 = vunpack.c.l.b16 %v256
        %v500 = vunpack.c.l.b16 %v257
        %v501 = vpack.c.b16 %v406, %v497
        %v502 = vpack.c.b16 %v408, %v498
        %v503 = vpack.c.b16 %v410, %v499
        %v504 = vpack.c.b16 %v412, %v500
        %v505 = vrot.slane %v501, 1
        %v506 = vrot.slane %v433, 1
        %v507 = vsel %vm376, %v505, %v506
        %v508 = vrot.slane %v502, 1
        %v509 = vrot.slane %v434, 1
        %v510 = vsel %vm376, %v508, %v509
        %v511 = vrot.slane %v503, 1
        %v512 = vrot.slane %v435, 1
        %v513 = vsel %vm376, %v511, %v512
        %v514 = vrot.slane %v504, 1
        %v515 = vrot.slane %v436, 1
        %v516 = vsel %vm376, %v514, %v515
        %517 = vrot.lane.b32.xlu0 %v507, 20
        %v518 = vpop.permute.xlu0 %517
        %519 = vrot.lane.b32.xlu0 %v510, 20
        %v520 = vpop.permute.xlu0 %519
        %521 = vrot.lane.b32.xlu0 %v513, 20
        %v522 = vpop.permute.xlu0 %521
        %523 = vrot.lane.b32.xlu0 %v516, 20
        %v524 = vpop.permute.xlu0 %523
        %v533 = vunpack.c.l.b16 %v259
        %v534 = vunpack.c.l.b16 %v260
        %v535 = vunpack.c.l.b16 %v261
        %v536 = vunpack.c.l.b16 %v262
        %v537 = vunpack.c.l.b16 %v263
        %v538 = vunpack.c.l.b16 %v264
        %v539 = vunpack.c.l.b16 %v265
        %v540 = vunpack.c.l.b16 %v266
        %v541 = vpack.c.b16 %v534, %v533
        %v542 = vpack.c.b16 %v536, %v535
        %v543 = vpack.c.b16 %v538, %v537
        %v544 = vpack.c.b16 %v540, %v539
        %545 = vrot.lane.b32.xlu0 %v541, 24
        %v546 = vpop.permute.xlu0 %545
        %547 = vrot.lane.b32.xlu0 %v542, 24
        %v548 = vpop.permute.xlu0 %547
        %549 = vrot.lane.b32.xlu0 %v543, 24
        %v550 = vpop.permute.xlu0 %549
        %551 = vrot.lane.b32.xlu0 %v544, 24
        %v552 = vpop.permute.xlu0 %551
        %v557 = vunpack.c.l.b16 %v267
        %v558 = vunpack.c.l.b16 %v268
        %v559 = vunpack.c.l.b16 %v269
        %v560 = vunpack.c.l.b16 %v270
        %v561 = vpack.c.b16 %v557, %v557
        %v562 = vpack.c.b16 %v558, %v558
        %v563 = vpack.c.b16 %v559, %v559
        %v564 = vpack.c.b16 %v560, %v560
        %v566 = vshrl.u32 %v541, 16
        %v568 = vshll.u32 %v541, 16
        %v570 = vrot.slane %v568, 1
        %v571 = vor.u32 %v566, %v570
        %v573 = vshll.u32 %v561, 16
        %v575 = vrot.slane %v573, 1
        %v576 = vsel %vm307, %v571, %v575
        %v578 = vshrl.u32 %v542, 16
        %v580 = vshll.u32 %v542, 16
        %v582 = vrot.slane %v580, 1
        %v583 = vor.u32 %v578, %v582
        %v585 = vshll.u32 %v562, 16
        %v587 = vrot.slane %v585, 1
        %v588 = vsel %vm307, %v583, %v587
        %v590 = vshrl.u32 %v543, 16
        %v592 = vshll.u32 %v543, 16
        %v594 = vrot.slane %v592, 1
        %v595 = vor.u32 %v590, %v594
        %v597 = vshll.u32 %v563, 16
        %v599 = vrot.slane %v597, 1
        %v600 = vsel %vm307, %v595, %v599
        %v602 = vshrl.u32 %v544, 16
        %v604 = vshll.u32 %v544, 16
        %v606 = vrot.slane %v604, 1
        %v607 = vor.u32 %v602, %v606
        %v609 = vshll.u32 %v564, 16
        %v611 = vrot.slane %v609, 1
        %v612 = vsel %vm307, %v607, %v611
        %613 = vrot.lane.b32.xlu0 %v576, 28
        %v614 = vpop.permute.xlu0 %613
        %615 = vrot.lane.b32.xlu0 %v588, 28
        %v616 = vpop.permute.xlu0 %615
        %617 = vrot.lane.b32.xlu0 %v600, 28
        %v618 = vpop.permute.xlu0 %617
        %619 = vrot.lane.b32.xlu0 %v612, 28
        %v620 = vpop.permute.xlu0 %619
        %v625 = vunpack.c.l.b16 %v271
        %v626 = vunpack.c.l.b16 %v272
        %v627 = vunpack.c.l.b16 %v273
        %v628 = vunpack.c.l.b16 %v274
        %v629 = vpack.c.b16 %v534, %v625
        %v630 = vpack.c.b16 %v536, %v626
        %v631 = vpack.c.b16 %v538, %v627
        %v632 = vpack.c.b16 %v540, %v628
        %v633 = vrot.slane %v629, 1
        %v634 = vrot.slane %v561, 1
        %v635 = vsel %vm376, %v633, %v634
        %v636 = vrot.slane %v630, 1
        %v637 = vrot.slane %v562, 1
        %v638 = vsel %vm376, %v636, %v637
        %v639 = vrot.slane %v631, 1
        %v640 = vrot.slane %v563, 1
        %v641 = vsel %vm376, %v639, %v640
        %v642 = vrot.slane %v632, 1
        %v643 = vrot.slane %v564, 1
        %v644 = vsel %vm376, %v642, %v643
        %645 = vrot.lane.b32.xlu0 %v635, 32
        %v646 = vpop.permute.xlu0 %645
        %647 = vrot.lane.b32.xlu0 %v638, 32
        %v648 = vpop.permute.xlu0 %647
        %649 = vrot.lane.b32.xlu0 %v641, 32
        %v650 = vpop.permute.xlu0 %649
        %651 = vrot.lane.b32.xlu0 %v644, 32
        %v652 = vpop.permute.xlu0 %651
        %vm653 = vcmask 31744
        %v655 = vsel %vm653, %v291, %v357
        %v657 = vsel %vm653, %v292, %v359
        %v659 = vsel %vm653, %v293, %v361
        %v661 = vsel %vm653, %v294, %v363
        %vm662 = vcmask 64512
        %v664 = vsel %vm662, %v655, %v390
        %v666 = vsel %vm662, %v657, %v392
        %v668 = vsel %vm662, %v659, %v394
        %v670 = vsel %vm662, %v661, %v396
        %vm671 = vcmask 97280
        %v673 = vsel %vm671, %v664, %v418
        %v675 = vsel %vm671, %v666, %v420
        %v677 = vsel %vm671, %v668, %v422
        %v679 = vsel %vm671, %v670, %v424
        %vm680 = vcmask 130048
        %v682 = vsel %vm680, %v673, %v486
        %v684 = vsel %vm680, %v675, %v488
        %v686 = vsel %vm680, %v677, %v490
        %v688 = vsel %vm680, %v679, %v492
        %vm689 = vcmask 162816
        %v691 = vsel %vm689, %v682, %v518
        %v693 = vsel %vm689, %v684, %v520
        %v695 = vsel %vm689, %v686, %v522
        %v697 = vsel %vm689, %v688, %v524
        %vm698 = vcmask 195584
        %v700 = vsel %vm698, %v691, %v546
        %v702 = vsel %vm698, %v693, %v548
        %v704 = vsel %vm698, %v695, %v550
        %v706 = vsel %vm698, %v697, %v552
        %vm707 = vcmask 228352
        %v709 = vsel %vm707, %v700, %v614
        %v711 = vsel %vm707, %v702, %v616
        %v713 = vsel %vm707, %v704, %v618
        %v715 = vsel %vm707, %v706, %v620
        %vm716 = vcmask 261120
        %v718 = vsel %vm716, %v709, %v646
        %v720 = vsel %vm716, %v711, %v648
        %v722 = vsel %vm716, %v713, %v650
        %v724 = vsel %vm716, %v715, %v652
        %vm725 = vcmask 293888
        %v727 = vsel %vm725, %v718, 0
        %v729 = vsel %vm725, %v720, 0
        %v731 = vsel %vm725, %v722, 0
        %v733 = vsel %vm725, %v724, 0
        %v735 = vunpack.c.l.bf16 %v727
        %v736 = vunpack.c.h.bf16 %v727
        %v737 = vunpack.c.l.bf16 %v729
        %v738 = vunpack.c.h.bf16 %v729
        %v739 = vunpack.c.l.bf16 %v731
        %v740 = vunpack.c.h.bf16 %v731
        %v741 = vunpack.c.l.bf16 %v733
        %v742 = vunpack.c.h.bf16 %v733
        %v743 = vpack.c.bf16 %v736, %v735
        %v744 = vpack.c.bf16 %v738, %v737
        %v745 = vpack.c.bf16 %v740, %v739
        %v746 = vpack.c.bf16 %v742, %v741
        %v747 = vld [vmem:[%s1] sm:$0xf]
        %v748 = vld [vmem:[%s1 + $0x4] sm:$0xf]
        %v749 = vld [vmem:[%s1 + $0x8] sm:$0xf]
        %v750 = vld [vmem:[%s1 + $0xc] sm:$0xf]
        %v751 = vld [vmem:[%s1 + $0x10] sm:$0xf]
        %v753 = vlaneseq
        %v754 = vshrl.u32 %v753, 7
        %v755 = vsub.s32 0, %v754
        %v756 = vrot.slane %v224, %v755
        %v763 = vunpack.c.l.b16 %v747
        %v764 = vunpack.c.l.b16 %v748
        %v765 = vunpack.c.l.b16 %v749
        %v766 = vunpack.c.l.b16 %v750
        %v767 = vunpack.c.l.b16 %v751
        %v768 = vpack.c.b16 %v764, %v763
        %v769 = vpack.c.b16 %v766, %v765
        %v770 = vpack.c.b16 %v767, %v767
        %vm773 = vcmask 326656
        %v775 = vsel %vm773, %v743, 0
        %v778 = vsel %vm773, %v744, 0
        %v781 = vsel %vm773, %v745, 0
        %v784 = vsel %vm773, %v746, 0
        %vm786 = vcmask 1043456
        %v788 = vsel %vm786, %v770, 0
        %790 = vmatprep.subr.bf16.mxu0 0
        %791 = vmatpush1.bf16.msra.mxu0 %v768
        %792 = vmatprep.subr.bf16.mxu0 0
        %793 = vmatpush1.bf16.msra.mxu0 %v769
        %794 = vmatprep.subr.bf16.mxu0 0
        %795 = vmatpush1.bf16.msra.mxu0 %v788
        %796 = vmatprep.subr.bf16.mxu0 0
        %797 = vmatpush1.bf16.msra.mxu0 0
        %798 = vmatprep.subr.bf16.mxu0 0
        %799 = vmatpush1.bf16.msra.mxu0 0
        %800 = vmatprep.subr.bf16.mxu0 0
        %801 = vmatpush1.bf16.msra.mxu0 0
        %802 = vmatprep.subr.bf16.mxu0 0
        %803 = vmatpush1.bf16.msra.mxu0 0
        %804 = vmatprep.subr.bf16.mxu0 0
        %805 = vmatpush1.bf16.msra.mxu0 0
        %806 = vmatprep.subr.bf16.mxu0 0
        %807 = vmatpush1.bf16.msra.mxu0 0
        %808 = vmatprep.subr.bf16.mxu0 0
        %809 = vmatpush1.bf16.msra.mxu0 0
        %810 = vmatprep.subr.bf16.mxu0 0
        %811 = vmatpush1.bf16.msra.mxu0 0
        %812 = vmatprep.subr.bf16.mxu0 0
        %813 = vmatpush1.bf16.msra.mxu0 0
        %814 = vmatprep.subr.bf16.mxu0 0
        %815 = vmatpush1.bf16.msra.mxu0 0
        %816 = vmatprep.subr.bf16.mxu0 0
        %817 = vmatpush1.bf16.msra.mxu0 0
        %818 = vmatprep.subr.bf16.mxu0 0
        %819 = vmatpush1.bf16.msra.mxu0 0
        %820 = vmatprep.subr.bf16.mxu0 0
        %821 = vmatpush1.bf16.msra.mxu0 0
        %822 = vmatprep.mubr.bf16.mxu0 0
        %823 = vmatmul.mubr.bf16.gmra.mrb[0].mxu0 %v775
        %v824 = vpop.f32.mrb[0].mxu0
        %v825 = vadd.f32 %v756, %v824
        %v826 = vpop.f32.mrb[0].mxu0
        %v827 = vpop.f32.mrb[0].mxu0
        %v828 = vadd.f32 %v756, %v827
        %v829 = vpop.f32.mrb[0].mxu0
        %830 = vmatprep.mubr.bf16.mxu0 0
        %831 = vmatmul.mubr.bf16.gmra.mrb[0].mxu0 %v778
        %v832 = vpop.f32.mrb[0].mxu0
        %v833 = vadd.f32 %v756, %v832
        %v834 = vpop.f32.mrb[0].mxu0
        %v835 = vpop.f32.mrb[0].mxu0
        %v836 = vadd.f32 %v756, %v835
        %v837 = vpop.f32.mrb[0].mxu0
        %838 = vmatprep.mubr.bf16.mxu0 0
        %839 = vmatmul.mubr.bf16.gmra.mrb[0].mxu0 %v781
        %v840 = vpop.f32.mrb[0].mxu0
        %v841 = vadd.f32 %v756, %v840
        %v842 = vpop.f32.mrb[0].mxu0
        %v843 = vpop.f32.mrb[0].mxu0
        %v844 = vadd.f32 %v756, %v843
        %v845 = vpop.f32.mrb[0].mxu0
        %846 = vmatprep.mubr.bf16.mxu0 0
        %847 = vmatmul.mubr.bf16.gmra.mrb[0].mxu0 %v784
        %v848 = vpop.f32.mrb[0].mxu0
        %v849 = vadd.f32 %v756, %v848
        %v850 = vpop.f32.mrb[0].mxu0
        %v851 = vpop.f32.mrb[0].mxu0
        %v852 = vadd.f32 %v756, %v851
        %v853 = vpop.f32.mrb[0].mxu0
        %854 = vdwg.mxu0
        %v855 = vmax.f32 %v825, 0.0
        %v856 = vmax.f32 %v828, 0.0
        %v857 = vmax.f32 %v833, 0.0
        %v858 = vmax.f32 %v836, 0.0
        %v859 = vmax.f32 %v841, 0.0
        %v860 = vmax.f32 %v844, 0.0
        %v861 = vmax.f32 %v849, 0.0
        %v862 = vmax.f32 %v852, 0.0
        %v863 = vpack.c.bf16 %v856, %v855
        %v864 = vpack.c.bf16 %v858, %v857
        %v865 = vpack.c.bf16 %v860, %v859
        %v866 = vpack.c.bf16 %v862, %v861
        %s867 = scalar_lea.vmem %s221, 48
        %v868 = vld [vmem:[%s867] sm:$0xf]
        %v869 = vld [vmem:[%s867 + $0x4] sm:$0xf]
        %v870 = vld [vmem:[%s867 + $0xc] sm:$0xf]
        %v871 = vld [vmem:[%s867 + $0x10] sm:$0xf]
        %v872 = vld [vmem:[%s867 + $0x18] sm:$0xf]
        %v873 = vld [vmem:[%s867 + $0x1c] sm:$0xf]
        %v874 = vld [vmem:[%s867 + $0x24] sm:$0xf]
        %v875 = vld [vmem:[%s867 + $0x28] sm:$0xf]
        %v876 = vld [vmem:[%s867 + $0x8] sm:$0x1]
        %v877 = vld [vmem:[%s867 + $0x14] sm:$0x1]
        %v878 = vld [vmem:[%s867 + $0x20] sm:$0x1]
        %v879 = vld [vmem:[%s867 + $0x2c] sm:$0x1]
        %v880 = vld [vmem:[%s867] sm:$0xe]
        %v881 = vld [vmem:[%s867 + $0xc] sm:$0xe]
        %v882 = vld [vmem:[%s867 + $0x18] sm:$0xe]
        %v883 = vld [vmem:[%s867 + $0x24] sm:$0xe]
        %s884 = scalar_lea.vmem %s221, 60
        %v885 = vld [vmem:[%s884] sm:$0xf]
        %v886 = vld [vmem:[%s884 + $0x4] sm:$0xf]
        %v887 = vld [vmem:[%s884 + $0xc] sm:$0xf]
        %v888 = vld [vmem:[%s884 + $0x10] sm:$0xf]
        %v889 = vld [vmem:[%s884 + $0x18] sm:$0xf]
        %v890 = vld [vmem:[%s884 + $0x1c] sm:$0xf]
        %v891 = vld [vmem:[%s884 + $0x24] sm:$0xf]
        %v892 = vld [vmem:[%s884 + $0x28] sm:$0xf]
        %v893 = vld [vmem:[%s884 + $0x8] sm:$0x1]
        %v894 = vld [vmem:[%s884 + $0x14] sm:$0x1]
        %v895 = vld [vmem:[%s884 + $0x20] sm:$0x1]
        %v896 = vld [vmem:[%s884 + $0x2c] sm:$0x1]
        %v897 = vld [vmem:[%s884] sm:$0xe]
        %v898 = vld [vmem:[%s884 + $0xc] sm:$0xe]
        %v899 = vld [vmem:[%s884 + $0x18] sm:$0xe]
        %v900 = vld [vmem:[%s884 + $0x24] sm:$0xe]
        %s901 = scalar_lea.vmem %s221, 72
        %v902 = vld [vmem:[%s901] sm:$0xf]
        %v903 = vld [vmem:[%s901 + $0x4] sm:$0xf]
        %v904 = vld [vmem:[%s901 + $0xc] sm:$0xf]
        %v905 = vld [vmem:[%s901 + $0x10] sm:$0xf]
        %v906 = vld [vmem:[%s901 + $0x18] sm:$0xf]
        %v907 = vld [vmem:[%s901 + $0x1c] sm:$0xf]
        %v908 = vld [vmem:[%s901 + $0x24] sm:$0xf]
        %v909 = vld [vmem:[%s901 + $0x28] sm:$0xf]
        %v910 = vld [vmem:[%s901 + $0x8] sm:$0x1]
        %v911 = vld [vmem:[%s901 + $0x14] sm:$0x1]
        %v912 = vld [vmem:[%s901 + $0x20] sm:$0x1]
        %v913 = vld [vmem:[%s901 + $0x2c] sm:$0x1]
        %v914 = vld [vmem:[%s901] sm:$0xe]
        %v915 = vld [vmem:[%s901 + $0xc] sm:$0xe]
        %v916 = vld [vmem:[%s901 + $0x18] sm:$0xe]
        %v917 = vld [vmem:[%s901 + $0x24] sm:$0xe]
        %v926 = vunpack.c.l.b16 %v868
        %v927 = vunpack.c.l.b16 %v869
        %v928 = vunpack.c.l.b16 %v870
        %v929 = vunpack.c.l.b16 %v871
        %v930 = vunpack.c.l.b16 %v872
        %v931 = vunpack.c.l.b16 %v873
        %v932 = vunpack.c.l.b16 %v874
        %v933 = vunpack.c.l.b16 %v875
        %v934 = vpack.c.b16 %v927, %v926
        %v935 = vpack.c.b16 %v929, %v928
        %v936 = vpack.c.b16 %v931, %v930
        %v937 = vpack.c.b16 %v933, %v932
        %v942 = vunpack.c.l.b16 %v876
        %v943 = vunpack.c.l.b16 %v877
        %v944 = vunpack.c.l.b16 %v878
        %v945 = vunpack.c.l.b16 %v879
        %v946 = vpack.c.b16 %v942, %v942
        %v947 = vpack.c.b16 %v943, %v943
        %v948 = vpack.c.b16 %v944, %v944
        %v949 = vpack.c.b16 %v945, %v945
        %v951 = vshrl.u32 %v934, 16
        %v953 = vshll.u32 %v934, 16
        %v955 = vrot.slane %v953, 1
        %v956 = vor.u32 %v951, %v955
        %v958 = vshll.u32 %v946, 16
        %v960 = vrot.slane %v958, 1
        %v961 = vsel %vm307, %v956, %v960
        %v963 = vshrl.u32 %v935, 16
        %v965 = vshll.u32 %v935, 16
        %v967 = vrot.slane %v965, 1
        %v968 = vor.u32 %v963, %v967
        %v970 = vshll.u32 %v947, 16
        %v972 = vrot.slane %v970, 1
        %v973 = vsel %vm307, %v968, %v972
        %v975 = vshrl.u32 %v936, 16
        %v977 = vshll.u32 %v936, 16
        %v979 = vrot.slane %v977, 1
        %v980 = vor.u32 %v975, %v979
        %v982 = vshll.u32 %v948, 16
        %v984 = vrot.slane %v982, 1
        %v985 = vsel %vm307, %v980, %v984
        %v987 = vshrl.u32 %v937, 16
        %v989 = vshll.u32 %v937, 16
        %v991 = vrot.slane %v989, 1
        %v992 = vor.u32 %v987, %v991
        %v994 = vshll.u32 %v949, 16
        %v996 = vrot.slane %v994, 1
        %v997 = vsel %vm307, %v992, %v996
        %998 = vrot.lane.b32.xlu0 %v961, 4
        %v999 = vpop.permute.xlu0 %998
        %1000 = vrot.lane.b32.xlu0 %v973, 4
        %v1001 = vpop.permute.xlu0 %1000
        %1002 = vrot.lane.b32.xlu0 %v985, 4
        %v1003 = vpop.permute.xlu0 %1002
        %1004 = vrot.lane.b32.xlu0 %v997, 4
        %v1005 = vpop.permute.xlu0 %1004
        %v1010 = vunpack.c.l.b16 %v880
        %v1011 = vunpack.c.l.b16 %v881
        %v1012 = vunpack.c.l.b16 %v882
        %v1013 = vunpack.c.l.b16 %v883
        %v1014 = vpack.c.b16 %v927, %v1010
        %v1015 = vpack.c.b16 %v929, %v1011
        %v1016 = vpack.c.b16 %v931, %v1012
        %v1017 = vpack.c.b16 %v933, %v1013
        %v1018 = vrot.slane %v1014, 1
        %v1019 = vrot.slane %v946, 1
        %v1020 = vsel %vm376, %v1018, %v1019
        %v1021 = vrot.slane %v1015, 1
        %v1022 = vrot.slane %v947, 1
        %v1023 = vsel %vm376, %v1021, %v1022
        %v1024 = vrot.slane %v1016, 1
        %v1025 = vrot.slane %v948, 1
        %v1026 = vsel %vm376, %v1024, %v1025
        %v1027 = vrot.slane %v1017, 1
        %v1028 = vrot.slane %v949, 1
        %v1029 = vsel %vm376, %v1027, %v1028
        %1030 = vrot.lane.b32.xlu0 %v1020, 8
        %v1031 = vpop.permute.xlu0 %1030
        %1032 = vrot.lane.b32.xlu0 %v1023, 8
        %v1033 = vpop.permute.xlu0 %1032
        %1034 = vrot.lane.b32.xlu0 %v1026, 8
        %v1035 = vpop.permute.xlu0 %1034
        %1036 = vrot.lane.b32.xlu0 %v1029, 8
        %v1037 = vpop.permute.xlu0 %1036
        %v1046 = vunpack.c.l.b16 %v885
        %v1047 = vunpack.c.l.b16 %v886
        %v1048 = vunpack.c.l.b16 %v887
        %v1049 = vunpack.c.l.b16 %v888
        %v1050 = vunpack.c.l.b16 %v889
        %v1051 = vunpack.c.l.b16 %v890
        %v1052 = vunpack.c.l.b16 %v891
        %v1053 = vunpack.c.l.b16 %v892
        %v1054 = vpack.c.b16 %v1047, %v1046
        %v1055 = vpack.c.b16 %v1049, %v1048
        %v1056 = vpack.c.b16 %v1051, %v1050
        %v1057 = vpack.c.b16 %v1053, %v1052
        %1058 = vrot.lane.b32.xlu0 %v1054, 12
        %v1059 = vpop.permute.xlu0 %1058
        %1060 = vrot.lane.b32.xlu0 %v1055, 12
        %v1061 = vpop.permute.xlu0 %1060
        %1062 = vrot.lane.b32.xlu0 %v1056, 12
        %v1063 = vpop.permute.xlu0 %1062
        %1064 = vrot.lane.b32.xlu0 %v1057, 12
        %v1065 = vpop.permute.xlu0 %1064
        %v1070 = vunpack.c.l.b16 %v893
        %v1071 = vunpack.c.l.b16 %v894
        %v1072 = vunpack.c.l.b16 %v895
        %v1073 = vunpack.c.l.b16 %v896
        %v1074 = vpack.c.b16 %v1070, %v1070
        %v1075 = vpack.c.b16 %v1071, %v1071
        %v1076 = vpack.c.b16 %v1072, %v1072
        %v1077 = vpack.c.b16 %v1073, %v1073
        %v1079 = vshrl.u32 %v1054, 16
        %v1081 = vshll.u32 %v1054, 16
        %v1083 = vrot.slane %v1081, 1
        %v1084 = vor.u32 %v1079, %v1083
        %v1086 = vshll.u32 %v1074, 16
        %v1088 = vrot.slane %v1086, 1
        %v1089 = vsel %vm307, %v1084, %v1088
        %v1091 = vshrl.u32 %v1055, 16
        %v1093 = vshll.u32 %v1055, 16
        %v1095 = vrot.slane %v1093, 1
        %v1096 = vor.u32 %v1091, %v1095
        %v1098 = vshll.u32 %v1075, 16
        %v1100 = vrot.slane %v1098, 1
        %v1101 = vsel %vm307, %v1096, %v1100
        %v1103 = vshrl.u32 %v1056, 16
        %v1105 = vshll.u32 %v1056, 16
        %v1107 = vrot.slane %v1105, 1
        %v1108 = vor.u32 %v1103, %v1107
        %v1110 = vshll.u32 %v1076, 16
        %v1112 = vrot.slane %v1110, 1
        %v1113 = vsel %vm307, %v1108, %v1112
        %v1115 = vshrl.u32 %v1057, 16
        %v1117 = vshll.u32 %v1057, 16
        %v1119 = vrot.slane %v1117, 1
        %v1120 = vor.u32 %v1115, %v1119
        %v1122 = vshll.u32 %v1077, 16
        %v1124 = vrot.slane %v1122, 1
        %v1125 = vsel %vm307, %v1120, %v1124
        %1126 = vrot.lane.b32.xlu0 %v1089, 16
        %v1127 = vpop.permute.xlu0 %1126
        %1128 = vrot.lane.b32.xlu0 %v1101, 16
        %v1129 = vpop.permute.xlu0 %1128
        %1130 = vrot.lane.b32.xlu0 %v1113, 16
        %v1131 = vpop.permute.xlu0 %1130
        %1132 = vrot.lane.b32.xlu0 %v1125, 16
        %v1133 = vpop.permute.xlu0 %1132
        %v1138 = vunpack.c.l.b16 %v897
        %v1139 = vunpack.c.l.b16 %v898
        %v1140 = vunpack.c.l.b16 %v899
        %v1141 = vunpack.c.l.b16 %v900
        %v1142 = vpack.c.b16 %v1047, %v1138
        %v1143 = vpack.c.b16 %v1049, %v1139
        %v1144 = vpack.c.b16 %v1051, %v1140
        %v1145 = vpack.c.b16 %v1053, %v1141
        %v1146 = vrot.slane %v1142, 1
        %v1147 = vrot.slane %v1074, 1
        %v1148 = vsel %vm376, %v1146, %v1147
        %v1149 = vrot.slane %v1143, 1
        %v1150 = vrot.slane %v1075, 1
        %v1151 = vsel %vm376, %v1149, %v1150
        %v1152 = vrot.slane %v1144, 1
        %v1153 = vrot.slane %v1076, 1
        %v1154 = vsel %vm376, %v1152, %v1153
        %v1155 = vrot.slane %v1145, 1
        %v1156 = vrot.slane %v1077, 1
        %v1157 = vsel %vm376, %v1155, %v1156
        %1158 = vrot.lane.b32.xlu0 %v1148, 20
        %v1159 = vpop.permute.xlu0 %1158
        %1160 = vrot.lane.b32.xlu0 %v1151, 20
        %v1161 = vpop.permute.xlu0 %1160
        %1162 = vrot.lane.b32.xlu0 %v1154, 20
        %v1163 = vpop.permute.xlu0 %1162
        %1164 = vrot.lane.b32.xlu0 %v1157, 20
        %v1165 = vpop.permute.xlu0 %1164
        %v1174 = vunpack.c.l.b16 %v902
        %v1175 = vunpack.c.l.b16 %v903
        %v1176 = vunpack.c.l.b16 %v904
        %v1177 = vunpack.c.l.b16 %v905
        %v1178 = vunpack.c.l.b16 %v906
        %v1179 = vunpack.c.l.b16 %v907
        %v1180 = vunpack.c.l.b16 %v908
        %v1181 = vunpack.c.l.b16 %v909
        %v1182 = vpack.c.b16 %v1175, %v1174
        %v1183 = vpack.c.b16 %v1177, %v1176
        %v1184 = vpack.c.b16 %v1179, %v1178
        %v1185 = vpack.c.b16 %v1181, %v1180
        %1186 = vrot.lane.b32.xlu0 %v1182, 24
        %v1187 = vpop.permute.xlu0 %1186
        %1188 = vrot.lane.b32.xlu0 %v1183, 24
        %v1189 = vpop.permute.xlu0 %1188
        %1190 = vrot.lane.b32.xlu0 %v1184, 24
        %v1191 = vpop.permute.xlu0 %1190
        %1192 = vrot.lane.b32.xlu0 %v1185, 24
        %v1193 = vpop.permute.xlu0 %1192
        %v1198 = vunpack.c.l.b16 %v910
        %v1199 = vunpack.c.l.b16 %v911
        %v1200 = vunpack.c.l.b16 %v912
        %v1201 = vunpack.c.l.b16 %v913
        %v1202 = vpack.c.b16 %v1198, %v1198
        %v1203 = vpack.c.b16 %v1199, %v1199
        %v1204 = vpack.c.b16 %v1200, %v1200
        %v1205 = vpack.c.b16 %v1201, %v1201
        %v1207 = vshrl.u32 %v1182, 16
        %v1209 = vshll.u32 %v1182, 16
        %v1211 = vrot.slane %v1209, 1
        %v1212 = vor.u32 %v1207, %v1211
        %v1214 = vshll.u32 %v1202, 16
        %v1216 = vrot.slane %v1214, 1
        %v1217 = vsel %vm307, %v1212, %v1216
        %v1219 = vshrl.u32 %v1183, 16
        %v1221 = vshll.u32 %v1183, 16
        %v1223 = vrot.slane %v1221, 1
        %v1224 = vor.u32 %v1219, %v1223
        %v1226 = vshll.u32 %v1203, 16
        %v1228 = vrot.slane %v1226, 1
        %v1229 = vsel %vm307, %v1224, %v1228
        %v1231 = vshrl.u32 %v1184, 16
        %v1233 = vshll.u32 %v1184, 16
        %v1235 = vrot.slane %v1233, 1
        %v1236 = vor.u32 %v1231, %v1235
        %v1238 = vshll.u32 %v1204, 16
        %v1240 = vrot.slane %v1238, 1
        %v1241 = vsel %vm307, %v1236, %v1240
        %v1243 = vshrl.u32 %v1185, 16
        %v1245 = vshll.u32 %v1185, 16
        %v1247 = vrot.slane %v1245, 1
        %v1248 = vor.u32 %v1243, %v1247
        %v1250 = vshll.u32 %v1205, 16
        %v1252 = vrot.slane %v1250, 1
        %v1253 = vsel %vm307, %v1248, %v1252
        %1254 = vrot.lane.b32.xlu0 %v1217, 28
        %v1255 = vpop.permute.xlu0 %1254
        %1256 = vrot.lane.b32.xlu0 %v1229, 28
        %v1257 = vpop.permute.xlu0 %1256
        %1258 = vrot.lane.b32.xlu0 %v1241, 28
        %v1259 = vpop.permute.xlu0 %1258
        %1260 = vrot.lane.b32.xlu0 %v1253, 28
        %v1261 = vpop.permute.xlu0 %1260
        %v1266 = vunpack.c.l.b16 %v914
        %v1267 = vunpack.c.l.b16 %v915
        %v1268 = vunpack.c.l.b16 %v916
        %v1269 = vunpack.c.l.b16 %v917
        %v1270 = vpack.c.b16 %v1175, %v1266
        %v1271 = vpack.c.b16 %v1177, %v1267
        %v1272 = vpack.c.b16 %v1179, %v1268
        %v1273 = vpack.c.b16 %v1181, %v1269
        %v1274 = vrot.slane %v1270, 1
        %v1275 = vrot.slane %v1202, 1
        %v1276 = vsel %vm376, %v1274, %v1275
        %v1277 = vrot.slane %v1271, 1
        %v1278 = vrot.slane %v1203, 1
        %v1279 = vsel %vm376, %v1277, %v1278
        %v1280 = vrot.slane %v1272, 1
        %v1281 = vrot.slane %v1204, 1
        %v1282 = vsel %vm376, %v1280, %v1281
        %v1283 = vrot.slane %v1273, 1
        %v1284 = vrot.slane %v1205, 1
        %v1285 = vsel %vm376, %v1283, %v1284
        %1286 = vrot.lane.b32.xlu0 %v1276, 32
        %v1287 = vpop.permute.xlu0 %1286
        %1288 = vrot.lane.b32.xlu0 %v1279, 32
        %v1289 = vpop.permute.xlu0 %1288
        %1290 = vrot.lane.b32.xlu0 %v1282, 32
        %v1291 = vpop.permute.xlu0 %1290
        %1292 = vrot.lane.b32.xlu0 %v1285, 32
        %v1293 = vpop.permute.xlu0 %1292
        %v1295 = vsel %vm653, %v934, %v999
        %v1297 = vsel %vm653, %v935, %v1001
        %v1299 = vsel %vm653, %v936, %v1003
        %v1301 = vsel %vm653, %v937, %v1005
        %v1303 = vsel %vm662, %v1295, %v1031
        %v1305 = vsel %vm662, %v1297, %v1033
        %v1307 = vsel %vm662, %v1299, %v1035
        %v1309 = vsel %vm662, %v1301, %v1037
        %v1311 = vsel %vm671, %v1303, %v1059
        %v1313 = vsel %vm671, %v1305, %v1061
        %v1315 = vsel %vm671, %v1307, %v1063
        %v1317 = vsel %vm671, %v1309, %v1065
        %v1319 = vsel %vm680, %v1311, %v1127
        %v1321 = vsel %vm680, %v1313, %v1129
        %v1323 = vsel %vm680, %v1315, %v1131
        %v1325 = vsel %vm680, %v1317, %v1133
        %v1327 = vsel %vm689, %v1319, %v1159
        %v1329 = vsel %vm689, %v1321, %v1161
        %v1331 = vsel %vm689, %v1323, %v1163
        %v1333 = vsel %vm689, %v1325, %v1165
        %v1335 = vsel %vm698, %v1327, %v1187
        %v1337 = vsel %vm698, %v1329, %v1189
        %v1339 = vsel %vm698, %v1331, %v1191
        %v1341 = vsel %vm698, %v1333, %v1193
        %v1343 = vsel %vm707, %v1335, %v1255
        %v1345 = vsel %vm707, %v1337, %v1257
        %v1347 = vsel %vm707, %v1339, %v1259
        %v1349 = vsel %vm707, %v1341, %v1261
        %v1351 = vsel %vm716, %v1343, %v1287
        %v1353 = vsel %vm716, %v1345, %v1289
        %v1355 = vsel %vm716, %v1347, %v1291
        %v1357 = vsel %vm716, %v1349, %v1293
        %v1358 = vsel %vm725, %v1351, 0
        %v1360 = vsel %vm725, %v1353, 0
        %v1362 = vsel %vm725, %v1355, 0
        %v1364 = vsel %vm725, %v1357, 0
        %v1366 = vunpack.c.l.bf16 %v1358
        %v1367 = vunpack.c.h.bf16 %v1358
        %v1368 = vunpack.c.l.bf16 %v1360
        %v1369 = vunpack.c.h.bf16 %v1360
        %v1370 = vunpack.c.l.bf16 %v1362
        %v1371 = vunpack.c.h.bf16 %v1362
        %v1372 = vunpack.c.l.bf16 %v1364
        %v1373 = vunpack.c.h.bf16 %v1364
        %v1374 = vpack.c.bf16 %v1367, %v1366
        %v1375 = vpack.c.bf16 %v1369, %v1368
        %v1376 = vpack.c.bf16 %v1371, %v1370
        %v1377 = vpack.c.bf16 %v1373, %v1372
        %v1379 = vsel %vm773, %v1374, 0
        %v1382 = vsel %vm773, %v1375, 0
        %v1385 = vsel %vm773, %v1376, 0
        %v1388 = vsel %vm773, %v1377, 0
        %1390 = vmatprep.subr.bf16.mxu0 0
        %1391 = vmatpush1.bf16.msra.mxu0 %v768
        %1392 = vmatprep.subr.bf16.mxu0 0
        %1393 = vmatpush1.bf16.msra.mxu0 %v769
        %1394 = vmatprep.subr.bf16.mxu0 0
        %1395 = vmatpush1.bf16.msra.mxu0 %v788
        %1396 = vmatprep.subr.bf16.mxu0 0
        %1397 = vmatpush1.bf16.msra.mxu0 0
        %1398 = vmatprep.subr.bf16.mxu0 0
        %1399 = vmatpush1.bf16.msra.mxu0 0
        %1400 = vmatprep.subr.bf16.mxu0 0
        %1401 = vmatpush1.bf16.msra.mxu0 0
        %1402 = vmatprep.subr.bf16.mxu0 0
        %1403 = vmatpush1.bf16.msra.mxu0 0
        %1404 = vmatprep.subr.bf16.mxu0 0
        %1405 = vmatpush1.bf16.msra.mxu0 0
        %1406 = vmatprep.subr.bf16.mxu0 0
        %1407 = vmatpush1.bf16.msra.mxu0 0
        %1408 = vmatprep.subr.bf16.mxu0 0
        %1409 = vmatpush1.bf16.msra.mxu0 0
        %1410 = vmatprep.subr.bf16.mxu0 0
        %1411 = vmatpush1.bf16.msra.mxu0 0
        %1412 = vmatprep.subr.bf16.mxu0 0
        %1413 = vmatpush1.bf16.msra.mxu0 0
        %1414 = vmatprep.subr.bf16.mxu0 0
        %1415 = vmatpush1.bf16.msra.mxu0 0
        %1416 = vmatprep.subr.bf16.mxu0 0
        %1417 = vmatpush1.bf16.msra.mxu0 0
        %1418 = vmatprep.subr.bf16.mxu0 0
        %1419 = vmatpush1.bf16.msra.mxu0 0
        %1420 = vmatprep.subr.bf16.mxu0 0
        %1421 = vmatpush1.bf16.msra.mxu0 0
        %1422 = vmatprep.mubr.bf16.mxu0 0
        %1423 = vmatmul.mubr.bf16.gmra.mrb[0].mxu0 %v1379
        %v1424 = vpop.f32.mrb[0].mxu0
        %v1425 = vadd.f32 %v756, %v1424
        %v1426 = vpop.f32.mrb[0].mxu0
        %v1427 = vpop.f32.mrb[0].mxu0
        %v1428 = vadd.f32 %v756, %v1427
        %v1429 = vpop.f32.mrb[0].mxu0
        %1430 = vmatprep.mubr.bf16.mxu0 0
        %1431 = vmatmul.mubr.bf16.gmra.mrb[0].mxu0 %v1382
        %v1432 = vpop.f32.mrb[0].mxu0
        %v1433 = vadd.f32 %v756, %v1432
        %v1434 = vpop.f32.mrb[0].mxu0
        %v1435 = vpop.f32.mrb[0].mxu0
        %v1436 = vadd.f32 %v756, %v1435
        %v1437 = vpop.f32.mrb[0].mxu0
        %1438 = vmatprep.mubr.bf16.mxu0 0
        %1439 = vmatmul.mubr.bf16.gmra.mrb[0].mxu0 %v1385
        %v1440 = vpop.f32.mrb[0].mxu0
        %v1441 = vadd.f32 %v756, %v1440
        %v1442 = vpop.f32.mrb[0].mxu0
        %v1443 = vpop.f32.mrb[0].mxu0
        %v1444 = vadd.f32 %v756, %v1443
        %v1445 = vpop.f32.mrb[0].mxu0
        %1446 = vmatprep.mubr.bf16.mxu0 0
        %1447 = vmatmul.mubr.bf16.gmra.mrb[0].mxu0 %v1388
        %v1448 = vpop.f32.mrb[0].mxu0
        %v1449 = vadd.f32 %v756, %v1448
        %v1450 = vpop.f32.mrb[0].mxu0
        %v1451 = vpop.f32.mrb[0].mxu0
        %v1452 = vadd.f32 %v756, %v1451
        %v1453 = vpop.f32.mrb[0].mxu0
        %1454 = vdwg.mxu0
        %v1455 = vmax.f32 %v1425, 0.0
        %v1456 = vmax.f32 %v1428, 0.0
        %v1457 = vmax.f32 %v1433, 0.0
        %v1458 = vmax.f32 %v1436, 0.0
        %v1459 = vmax.f32 %v1441, 0.0
        %v1460 = vmax.f32 %v1444, 0.0
        %v1461 = vmax.f32 %v1449, 0.0
        %v1462 = vmax.f32 %v1452, 0.0
        %v1463 = vpack.c.bf16 %v1456, %v1455
        %v1464 = vpack.c.bf16 %v1458, %v1457
        %v1465 = vpack.c.bf16 %v1460, %v1459
        %v1466 = vpack.c.bf16 %v1462, %v1461
        %vm1467 = vcmask 523264
        %v1469 = vsel %vm1467, 1065369472, 0
        %1471 = vmatprep.subr.bf16.mxu0 0
        %1472 = vmatpush1.bf16.msra.mxu0 %v1463
        %1473 = vmatprep.subr.bf16.mxu0 0
        %1474 = vmatpush1.bf16.msra.mxu0 %v1464
        %1475 = vmatprep.subr.bf16.mxu0 0
        %1476 = vmatpush1.bf16.msra.mxu0 %v1465
        %1477 = vmatprep.subr.bf16.mxu0 0
        %1478 = vmatpush1.bf16.msra.mxu0 %v1466
        %1479 = vmatprep.subr.bf16.mxu0 0
        %1480 = vmatpush1.bf16.msra.mxu0 0
        %1481 = vmatprep.subr.bf16.mxu0 0
        %1482 = vmatpush1.bf16.msra.mxu0 0
        %1483 = vmatprep.subr.bf16.mxu0 0
        %1484 = vmatpush1.bf16.msra.mxu0 0
        %1485 = vmatprep.subr.bf16.mxu0 0
        %1486 = vmatpush1.bf16.msra.mxu0 0
        %1487 = vmatprep.subr.bf16.mxu0 0
        %1488 = vmatpush1.bf16.msra.mxu0 0
        %1489 = vmatprep.subr.bf16.mxu0 0
        %1490 = vmatpush1.bf16.msra.mxu0 0
        %1491 = vmatprep.subr.bf16.mxu0 0
        %1492 = vmatpush1.bf16.msra.mxu0 0
        %1493 = vmatprep.subr.bf16.mxu0 0
        %1494 = vmatpush1.bf16.msra.mxu0 0
        %1495 = vmatprep.subr.bf16.mxu0 0
        %1496 = vmatpush1.bf16.msra.mxu0 0
        %1497 = vmatprep.subr.bf16.mxu0 0
        %1498 = vmatpush1.bf16.msra.mxu0 0
        %1499 = vmatprep.subr.bf16.mxu0 0
        %1500 = vmatpush1.bf16.msra.mxu0 0
        %1501 = vmatprep.subr.bf16.mxu0 0
        %1502 = vmatpush1.bf16.msra.mxu0 0
        %1503 = vmatprep.mubr.bf16.mxu0 0
        %1504 = vmatmul.mubr.bf16.gmra.mrb[0].mxu0 %v1469
        %v1505 = vpop.f32.mrb[0].mxu0
        %v1506 = vadd.f32 0.0, %v1505
        %v1507 = vpop.f32.mrb[0].mxu0
        %v1508 = vpop.f32.mrb[0].mxu0
        %v1509 = vpop.f32.mrb[0].mxu0
        %1510 = vdwg.mxu0
        %1511 = vmatprep.subr.bf16.mxu0 0
        %1512 = vmatpush1.bf16.msra.mxu0 %v863
        %1513 = vmatprep.subr.bf16.mxu0 0
        %1514 = vmatpush1.bf16.msra.mxu0 %v864
        %1515 = vmatprep.subr.bf16.mxu0 0
        %1516 = vmatpush1.bf16.msra.mxu0 %v865
        %1517 = vmatprep.subr.bf16.mxu0 0
        %1518 = vmatpush1.bf16.msra.mxu0 %v866
        %1519 = vmatprep.subr.bf16.mxu0 0
        %1520 = vmatpush1.bf16.msra.mxu0 0
        %1521 = vmatprep.subr.bf16.mxu0 0
        %1522 = vmatpush1.bf16.msra.mxu0 0
        %1523 = vmatprep.subr.bf16.mxu0 0
        %1524 = vmatpush1.bf16.msra.mxu0 0
        %1525 = vmatprep.subr.bf16.mxu0 0
        %1526 = vmatpush1.bf16.msra.mxu0 0
        %1527 = vmatprep.subr.bf16.mxu0 0
        %1528 = vmatpush1.bf16.msra.mxu0 0
        %1529 = vmatprep.subr.bf16.mxu0 0
        %1530 = vmatpush1.bf16.msra.mxu0 0
        %1531 = vmatprep.subr.bf16.mxu0 0
        %1532 = vmatpush1.bf16.msra.mxu0 0
        %1533 = vmatprep.subr.bf16.mxu0 0
        %1534 = vmatpush1.bf16.msra.mxu0 0
        %1535 = vmatprep.subr.bf16.mxu0 0
        %1536 = vmatpush1.bf16.msra.mxu0 0
        %1537 = vmatprep.subr.bf16.mxu0 0
        %1538 = vmatpush1.bf16.msra.mxu0 0
        %1539 = vmatprep.subr.bf16.mxu0 0
        %1540 = vmatpush1.bf16.msra.mxu0 0
        %1541 = vmatprep.subr.bf16.mxu0 0
        %1542 = vmatpush1.bf16.msra.mxu0 0
        %1543 = vmatprep.mubr.bf16.mxu0 0
        %1544 = vmatmul.mubr.bf16.gmra.mrb[0].mxu0 %v1469
        %v1545 = vpop.f32.mrb[0].mxu0
        %v1546 = vadd.f32 %v1506, %v1545
        %v1547 = vpop.f32.mrb[0].mxu0
        %v1548 = vpop.f32.mrb[0].mxu0
        %v1549 = vpop.f32.mrb[0].mxu0
        %1550 = vdwg.mxu0
        %s1551 = scalar_lea.vmem %s221, 96
        %v1552 = vld [vmem:[%s1551] sm:$0xf]
        %v1553 = vld [vmem:[%s1551 + $0x4] sm:$0xf]
        %v1554 = vld [vmem:[%s1551 + $0xc] sm:$0xf]
        %v1555 = vld [vmem:[%s1551 + $0x10] sm:$0xf]
        %v1556 = vld [vmem:[%s1551 + $0x18] sm:$0xf]
        %v1557 = vld [vmem:[%s1551 + $0x1c] sm:$0xf]
        %v1558 = vld [vmem:[%s1551 + $0x24] sm:$0xf]
        %v1559 = vld [vmem:[%s1551 + $0x28] sm:$0xf]
        %v1560 = vld [vmem:[%s1551 + $0x8] sm:$0x1]
        %v1561 = vld [vmem:[%s1551 + $0x14] sm:$0x1]
        %v1562 = vld [vmem:[%s1551 + $0x20] sm:$0x1]
        %v1563 = vld [vmem:[%s1551 + $0x2c] sm:$0x1]
        %v1564 = vld [vmem:[%s1551] sm:$0xe]
        %v1565 = vld [vmem:[%s1551 + $0xc] sm:$0xe]
        %v1566 = vld [vmem:[%s1551 + $0x18] sm:$0xe]
        %v1567 = vld [vmem:[%s1551 + $0x24] sm:$0xe]
        %s1568 = scalar_lea.vmem %s221, 108
        %v1569 = vld [vmem:[%s1568] sm:$0xf]
        %v1570 = vld [vmem:[%s1568 + $0x4] sm:$0xf]
        %v1571 = vld [vmem:[%s1568 + $0xc] sm:$0xf]
        %v1572 = vld [vmem:[%s1568 + $0x10] sm:$0xf]
        %v1573 = vld [vmem:[%s1568 + $0x18] sm:$0xf]
        %v1574 = vld [vmem:[%s1568 + $0x1c] sm:$0xf]
        %v1575 = vld [vmem:[%s1568 + $0x24] sm:$0xf]
        %v1576 = vld [vmem:[%s1568 + $0x28] sm:$0xf]
        %v1577 = vld [vmem:[%s1568 + $0x8] sm:$0x1]
        %v1578 = vld [vmem:[%s1568 + $0x14] sm:$0x1]
        %v1579 = vld [vmem:[%s1568 + $0x20] sm:$0x1]
        %v1580 = vld [vmem:[%s1568 + $0x2c] sm:$0x1]
        %v1581 = vld [vmem:[%s1568] sm:$0xe]
        %v1582 = vld [vmem:[%s1568 + $0xc] sm:$0xe]
        %v1583 = vld [vmem:[%s1568 + $0x18] sm:$0xe]
        %v1584 = vld [vmem:[%s1568 + $0x24] sm:$0xe]
        %s1585 = scalar_lea.vmem %s221, 120
        %v1586 = vld [vmem:[%s1585] sm:$0xf]
        %v1587 = vld [vmem:[%s1585 + $0x4] sm:$0xf]
        %v1588 = vld [vmem:[%s1585 + $0xc] sm:$0xf]
        %v1589 = vld [vmem:[%s1585 + $0x10] sm:$0xf]
        %v1590 = vld [vmem:[%s1585 + $0x18] sm:$0xf]
        %v1591 = vld [vmem:[%s1585 + $0x1c] sm:$0xf]
        %v1592 = vld [vmem:[%s1585 + $0x24] sm:$0xf]
        %v1593 = vld [vmem:[%s1585 + $0x28] sm:$0xf]
        %v1594 = vld [vmem:[%s1585 + $0x8] sm:$0x1]
        %v1595 = vld [vmem:[%s1585 + $0x14] sm:$0x1]
        %v1596 = vld [vmem:[%s1585 + $0x20] sm:$0x1]
        %v1597 = vld [vmem:[%s1585 + $0x2c] sm:$0x1]
        %v1598 = vld [vmem:[%s1585] sm:$0xe]
        %v1599 = vld [vmem:[%s1585 + $0xc] sm:$0xe]
        %v1600 = vld [vmem:[%s1585 + $0x18] sm:$0xe]
        %v1601 = vld [vmem:[%s1585 + $0x24] sm:$0xe]
        %v1610 = vunpack.c.l.b16 %v1552
        %v1611 = vunpack.c.l.b16 %v1553
        %v1612 = vunpack.c.l.b16 %v1554
        %v1613 = vunpack.c.l.b16 %v1555
        %v1614 = vunpack.c.l.b16 %v1556
        %v1615 = vunpack.c.l.b16 %v1557
        %v1616 = vunpack.c.l.b16 %v1558
        %v1617 = vunpack.c.l.b16 %v1559
        %v1618 = vpack.c.b16 %v1611, %v1610
        %v1619 = vpack.c.b16 %v1613, %v1612
        %v1620 = vpack.c.b16 %v1615, %v1614
        %v1621 = vpack.c.b16 %v1617, %v1616
        %v1626 = vunpack.c.l.b16 %v1560
        %v1627 = vunpack.c.l.b16 %v1561
        %v1628 = vunpack.c.l.b16 %v1562
        %v1629 = vunpack.c.l.b16 %v1563
        %v1630 = vpack.c.b16 %v1626, %v1626
        %v1631 = vpack.c.b16 %v1627, %v1627
        %v1632 = vpack.c.b16 %v1628, %v1628
        %v1633 = vpack.c.b16 %v1629, %v1629
        %v1635 = vshrl.u32 %v1618, 16
        %v1637 = vshll.u32 %v1618, 16
        %v1639 = vrot.slane %v1637, 1
        %v1640 = vor.u32 %v1635, %v1639
        %v1642 = vshll.u32 %v1630, 16
        %v1644 = vrot.slane %v1642, 1
        %v1645 = vsel %vm307, %v1640, %v1644
        %v1647 = vshrl.u32 %v1619, 16
        %v1649 = vshll.u32 %v1619, 16
        %v1651 = vrot.slane %v1649, 1
        %v1652 = vor.u32 %v1647, %v1651
        %v1654 = vshll.u32 %v1631, 16
        %v1656 = vrot.slane %v1654, 1
        %v1657 = vsel %vm307, %v1652, %v1656
        %v1659 = vshrl.u32 %v1620, 16
        %v1661 = vshll.u32 %v1620, 16
        %v1663 = vrot.slane %v1661, 1
        %v1664 = vor.u32 %v1659, %v1663
        %v1666 = vshll.u32 %v1632, 16
        %v1668 = vrot.slane %v1666, 1
        %v1669 = vsel %vm307, %v1664, %v1668
        %v1671 = vshrl.u32 %v1621, 16
        %v1673 = vshll.u32 %v1621, 16
        %v1675 = vrot.slane %v1673, 1
        %v1676 = vor.u32 %v1671, %v1675
        %v1678 = vshll.u32 %v1633, 16
        %v1680 = vrot.slane %v1678, 1
        %v1681 = vsel %vm307, %v1676, %v1680
        %1682 = vrot.lane.b32.xlu0 %v1645, 4
        %v1683 = vpop.permute.xlu0 %1682
        %1684 = vrot.lane.b32.xlu0 %v1657, 4
        %v1685 = vpop.permute.xlu0 %1684
        %1686 = vrot.lane.b32.xlu0 %v1669, 4
        %v1687 = vpop.permute.xlu0 %1686
        %1688 = vrot.lane.b32.xlu0 %v1681, 4
        %v1689 = vpop.permute.xlu0 %1688
        %v1694 = vunpack.c.l.b16 %v1564
        %v1695 = vunpack.c.l.b16 %v1565
        %v1696 = vunpack.c.l.b16 %v1566
        %v1697 = vunpack.c.l.b16 %v1567
        %v1698 = vpack.c.b16 %v1611, %v1694
        %v1699 = vpack.c.b16 %v1613, %v1695
        %v1700 = vpack.c.b16 %v1615, %v1696
        %v1701 = vpack.c.b16 %v1617, %v1697
        %v1702 = vrot.slane %v1698, 1
        %v1703 = vrot.slane %v1630, 1
        %v1704 = vsel %vm376, %v1702, %v1703
        %v1705 = vrot.slane %v1699, 1
        %v1706 = vrot.slane %v1631, 1
        %v1707 = vsel %vm376, %v1705, %v1706
        %v1708 = vrot.slane %v1700, 1
        %v1709 = vrot.slane %v1632, 1
        %v1710 = vsel %vm376, %v1708, %v1709
        %v1711 = vrot.slane %v1701, 1
        %v1712 = vrot.slane %v1633, 1
        %v1713 = vsel %vm376, %v1711, %v1712
        %1714 = vrot.lane.b32.xlu0 %v1704, 8
        %v1715 = vpop.permute.xlu0 %1714
        %1716 = vrot.lane.b32.xlu0 %v1707, 8
        %v1717 = vpop.permute.xlu0 %1716
        %1718 = vrot.lane.b32.xlu0 %v1710, 8
        %v1719 = vpop.permute.xlu0 %1718
        %1720 = vrot.lane.b32.xlu0 %v1713, 8
        %v1721 = vpop.permute.xlu0 %1720
        %v1730 = vunpack.c.l.b16 %v1569
        %v1731 = vunpack.c.l.b16 %v1570
        %v1732 = vunpack.c.l.b16 %v1571
        %v1733 = vunpack.c.l.b16 %v1572
        %v1734 = vunpack.c.l.b16 %v1573
        %v1735 = vunpack.c.l.b16 %v1574
        %v1736 = vunpack.c.l.b16 %v1575
        %v1737 = vunpack.c.l.b16 %v1576
        %v1738 = vpack.c.b16 %v1731, %v1730
        %v1739 = vpack.c.b16 %v1733, %v1732
        %v1740 = vpack.c.b16 %v1735, %v1734
        %v1741 = vpack.c.b16 %v1737, %v1736
        %1742 = vrot.lane.b32.xlu0 %v1738, 12
        %v1743 = vpop.permute.xlu0 %1742
        %1744 = vrot.lane.b32.xlu0 %v1739, 12
        %v1745 = vpop.permute.xlu0 %1744
        %1746 = vrot.lane.b32.xlu0 %v1740, 12
        %v1747 = vpop.permute.xlu0 %1746
        %1748 = vrot.lane.b32.xlu0 %v1741, 12
        %v1749 = vpop.permute.xlu0 %1748
        %v1754 = vunpack.c.l.b16 %v1577
        %v1755 = vunpack.c.l.b16 %v1578
        %v1756 = vunpack.c.l.b16 %v1579
        %v1757 = vunpack.c.l.b16 %v1580
        %v1758 = vpack.c.b16 %v1754, %v1754
        %v1759 = vpack.c.b16 %v1755, %v1755
        %v1760 = vpack.c.b16 %v1756, %v1756
        %v1761 = vpack.c.b16 %v1757, %v1757
        %v1763 = vshrl.u32 %v1738, 16
        %v1765 = vshll.u32 %v1738, 16
        %v1767 = vrot.slane %v1765, 1
        %v1768 = vor.u32 %v1763, %v1767
        %v1770 = vshll.u32 %v1758, 16
        %v1772 = vrot.slane %v1770, 1
        %v1773 = vsel %vm307, %v1768, %v1772
        %v1775 = vshrl.u32 %v1739, 16
        %v1777 = vshll.u32 %v1739, 16
        %v1779 = vrot.slane %v1777, 1
        %v1780 = vor.u32 %v1775, %v1779
        %v1782 = vshll.u32 %v1759, 16
        %v1784 = vrot.slane %v1782, 1
        %v1785 = vsel %vm307, %v1780, %v1784
        %v1787 = vshrl.u32 %v1740, 16
        %v1789 = vshll.u32 %v1740, 16
        %v1791 = vrot.slane %v1789, 1
        %v1792 = vor.u32 %v1787, %v1791
        %v1794 = vshll.u32 %v1760, 16
        %v1796 = vrot.slane %v1794, 1
        %v1797 = vsel %vm307, %v1792, %v1796
        %v1799 = vshrl.u32 %v1741, 16
        %v1801 = vshll.u32 %v1741, 16
        %v1803 = vrot.slane %v1801, 1
        %v1804 = vor.u32 %v1799, %v1803
        %v1806 = vshll.u32 %v1761, 16
        %v1808 = vrot.slane %v1806, 1
        %v1809 = vsel %vm307, %v1804, %v1808
        %1810 = vrot.lane.b32.xlu0 %v1773, 16
        %v1811 = vpop.permute.xlu0 %1810
        %1812 = vrot.lane.b32.xlu0 %v1785, 16
        %v1813 = vpop.permute.xlu0 %1812
        %1814 = vrot.lane.b32.xlu0 %v1797, 16
        %v1815 = vpop.permute.xlu0 %1814
        %1816 = vrot.lane.b32.xlu0 %v1809, 16
        %v1817 = vpop.permute.xlu0 %1816
        %v1822 = vunpack.c.l.b16 %v1581
        %v1823 = vunpack.c.l.b16 %v1582
        %v1824 = vunpack.c.l.b16 %v1583
        %v1825 = vunpack.c.l.b16 %v1584
        %v1826 = vpack.c.b16 %v1731, %v1822
        %v1827 = vpack.c.b16 %v1733, %v1823
        %v1828 = vpack.c.b16 %v1735, %v1824
        %v1829 = vpack.c.b16 %v1737, %v1825
        %v1830 = vrot.slane %v1826, 1
        %v1831 = vrot.slane %v1758, 1
        %v1832 = vsel %vm376, %v1830, %v1831
        %v1833 = vrot.slane %v1827, 1
        %v1834 = vrot.slane %v1759, 1
        %v1835 = vsel %vm376, %v1833, %v1834
        %v1836 = vrot.slane %v1828, 1
        %v1837 = vrot.slane %v1760, 1
        %v1838 = vsel %vm376, %v1836, %v1837
        %v1839 = vrot.slane %v1829, 1
        %v1840 = vrot.slane %v1761, 1
        %v1841 = vsel %vm376, %v1839, %v1840
        %1842 = vrot.lane.b32.xlu0 %v1832, 20
        %v1843 = vpop.permute.xlu0 %1842
        %1844 = vrot.lane.b32.xlu0 %v1835, 20
        %v1845 = vpop.permute.xlu0 %1844
        %1846 = vrot.lane.b32.xlu0 %v1838, 20
        %v1847 = vpop.permute.xlu0 %1846
        %1848 = vrot.lane.b32.xlu0 %v1841, 20
        %v1849 = vpop.permute.xlu0 %1848
        %v1858 = vunpack.c.l.b16 %v1586
        %v1859 = vunpack.c.l.b16 %v1587
        %v1860 = vunpack.c.l.b16 %v1588
        %v1861 = vunpack.c.l.b16 %v1589
        %v1862 = vunpack.c.l.b16 %v1590
        %v1863 = vunpack.c.l.b16 %v1591
        %v1864 = vunpack.c.l.b16 %v1592
        %v1865 = vunpack.c.l.b16 %v1593
        %v1866 = vpack.c.b16 %v1859, %v1858
        %v1867 = vpack.c.b16 %v1861, %v1860
        %v1868 = vpack.c.b16 %v1863, %v1862
        %v1869 = vpack.c.b16 %v1865, %v1864
        %1870 = vrot.lane.b32.xlu0 %v1866, 24
        %v1871 = vpop.permute.xlu0 %1870
        %1872 = vrot.lane.b32.xlu0 %v1867, 24
        %v1873 = vpop.permute.xlu0 %1872
        %1874 = vrot.lane.b32.xlu0 %v1868, 24
        %v1875 = vpop.permute.xlu0 %1874
        %1876 = vrot.lane.b32.xlu0 %v1869, 24
        %v1877 = vpop.permute.xlu0 %1876
        %v1882 = vunpack.c.l.b16 %v1594
        %v1883 = vunpack.c.l.b16 %v1595
        %v1884 = vunpack.c.l.b16 %v1596
        %v1885 = vunpack.c.l.b16 %v1597
        %v1886 = vpack.c.b16 %v1882, %v1882
        %v1887 = vpack.c.b16 %v1883, %v1883
        %v1888 = vpack.c.b16 %v1884, %v1884
        %v1889 = vpack.c.b16 %v1885, %v1885
        %v1891 = vshrl.u32 %v1866, 16
        %v1893 = vshll.u32 %v1866, 16
        %v1895 = vrot.slane %v1893, 1
        %v1896 = vor.u32 %v1891, %v1895
        %v1898 = vshll.u32 %v1886, 16
        %v1900 = vrot.slane %v1898, 1
        %v1901 = vsel %vm307, %v1896, %v1900
        %v1903 = vshrl.u32 %v1867, 16
        %v1905 = vshll.u32 %v1867, 16
        %v1907 = vrot.slane %v1905, 1
        %v1908 = vor.u32 %v1903, %v1907
        %v1910 = vshll.u32 %v1887, 16
        %v1912 = vrot.slane %v1910, 1
        %v1913 = vsel %vm307, %v1908, %v1912
        %v1915 = vshrl.u32 %v1868, 16
        %v1917 = vshll.u32 %v1868, 16
        %v1919 = vrot.slane %v1917, 1
        %v1920 = vor.u32 %v1915, %v1919
        %v1922 = vshll.u32 %v1888, 16
        %v1924 = vrot.slane %v1922, 1
        %v1925 = vsel %vm307, %v1920, %v1924
        %v1927 = vshrl.u32 %v1869, 16
        %v1929 = vshll.u32 %v1869, 16
        %v1931 = vrot.slane %v1929, 1
        %v1932 = vor.u32 %v1927, %v1931
        %v1934 = vshll.u32 %v1889, 16
        %v1936 = vrot.slane %v1934, 1
        %v1937 = vsel %vm307, %v1932, %v1936
        %1938 = vrot.lane.b32.xlu0 %v1901, 28
        %v1939 = vpop.permute.xlu0 %1938
        %1940 = vrot.lane.b32.xlu0 %v1913, 28
        %v1941 = vpop.permute.xlu0 %1940
        %1942 = vrot.lane.b32.xlu0 %v1925, 28
        %v1943 = vpop.permute.xlu0 %1942
        %1944 = vrot.lane.b32.xlu0 %v1937, 28
        %v1945 = vpop.permute.xlu0 %1944
        %v1950 = vunpack.c.l.b16 %v1598
        %v1951 = vunpack.c.l.b16 %v1599
        %v1952 = vunpack.c.l.b16 %v1600
        %v1953 = vunpack.c.l.b16 %v1601
        %v1954 = vpack.c.b16 %v1859, %v1950
        %v1955 = vpack.c.b16 %v1861, %v1951
        %v1956 = vpack.c.b16 %v1863, %v1952
        %v1957 = vpack.c.b16 %v1865, %v1953
        %v1958 = vrot.slane %v1954, 1
        %v1959 = vrot.slane %v1886, 1
        %v1960 = vsel %vm376, %v1958, %v1959
        %v1961 = vrot.slane %v1955, 1
        %v1962 = vrot.slane %v1887, 1
        %v1963 = vsel %vm376, %v1961, %v1962
        %v1964 = vrot.slane %v1956, 1
        %v1965 = vrot.slane %v1888, 1
        %v1966 = vsel %vm376, %v1964, %v1965
        %v1967 = vrot.slane %v1957, 1
        %v1968 = vrot.slane %v1889, 1
        %v1969 = vsel %vm376, %v1967, %v1968
        %1970 = vrot.lane.b32.xlu0 %v1960, 32
        %v1971 = vpop.permute.xlu0 %1970
        %1972 = vrot.lane.b32.xlu0 %v1963, 32
        %v1973 = vpop.permute.xlu0 %1972
        %1974 = vrot.lane.b32.xlu0 %v1966, 32
        %v1975 = vpop.permute.xlu0 %1974
        %1976 = vrot.lane.b32.xlu0 %v1969, 32
        %v1977 = vpop.permute.xlu0 %1976
        %v1979 = vsel %vm653, %v1618, %v1683
        %v1981 = vsel %vm653, %v1619, %v1685
        %v1983 = vsel %vm653, %v1620, %v1687
        %v1985 = vsel %vm653, %v1621, %v1689
        %v1987 = vsel %vm662, %v1979, %v1715
        %v1989 = vsel %vm662, %v1981, %v1717
        %v1991 = vsel %vm662, %v1983, %v1719
        %v1993 = vsel %vm662, %v1985, %v1721
        %v1995 = vsel %vm671, %v1987, %v1743
        %v1997 = vsel %vm671, %v1989, %v1745
        %v1999 = vsel %vm671, %v1991, %v1747
        %v2001 = vsel %vm671, %v1993, %v1749
        %v2003 = vsel %vm680, %v1995, %v1811
        %v2005 = vsel %vm680, %v1997, %v1813
        %v2007 = vsel %vm680, %v1999, %v1815
        %v2009 = vsel %vm680, %v2001, %v1817
        %v2011 = vsel %vm689, %v2003, %v1843
        %v2013 = vsel %vm689, %v2005, %v1845
        %v2015 = vsel %vm689, %v2007, %v1847
        %v2017 = vsel %vm689, %v2009, %v1849
        %v2019 = vsel %vm698, %v2011, %v1871
        %v2021 = vsel %vm698, %v2013, %v1873
        %v2023 = vsel %vm698, %v2015, %v1875
        %v2025 = vsel %vm698, %v2017, %v1877
        %v2027 = vsel %vm707, %v2019, %v1939
        %v2029 = vsel %vm707, %v2021, %v1941
        %v2031 = vsel %vm707, %v2023, %v1943
        %v2033 = vsel %vm707, %v2025, %v1945
        %v2035 = vsel %vm716, %v2027, %v1971
        %v2037 = vsel %vm716, %v2029, %v1973
        %v2039 = vsel %vm716, %v2031, %v1975
        %v2041 = vsel %vm716, %v2033, %v1977
        %v2042 = vsel %vm725, %v2035, 0
        %v2044 = vsel %vm725, %v2037, 0
        %v2046 = vsel %vm725, %v2039, 0
        %v2048 = vsel %vm725, %v2041, 0
        %v2050 = vunpack.c.l.bf16 %v2042
        %v2051 = vunpack.c.h.bf16 %v2042
        %v2052 = vunpack.c.l.bf16 %v2044
        %v2053 = vunpack.c.h.bf16 %v2044
        %v2054 = vunpack.c.l.bf16 %v2046
        %v2055 = vunpack.c.h.bf16 %v2046
        %v2056 = vunpack.c.l.bf16 %v2048
        %v2057 = vunpack.c.h.bf16 %v2048
        %v2058 = vpack.c.bf16 %v2051, %v2050
        %v2059 = vpack.c.bf16 %v2053, %v2052
        %v2060 = vpack.c.bf16 %v2055, %v2054
        %v2061 = vpack.c.bf16 %v2057, %v2056
        %v2063 = vsel %vm773, %v2058, 0
        %v2066 = vsel %vm773, %v2059, 0
        %v2069 = vsel %vm773, %v2060, 0
        %v2072 = vsel %vm773, %v2061, 0
        %2074 = vmatprep.subr.bf16.mxu0 0
        %2075 = vmatpush1.bf16.msra.mxu0 %v768
        %2076 = vmatprep.subr.bf16.mxu0 0
        %2077 = vmatpush1.bf16.msra.mxu0 %v769
        %2078 = vmatprep.subr.bf16.mxu0 0
        %2079 = vmatpush1.bf16.msra.mxu0 %v788
        %2080 = vmatprep.subr.bf16.mxu0 0
        %2081 = vmatpush1.bf16.msra.mxu0 0
        %2082 = vmatprep.subr.bf16.mxu0 0
        %2083 = vmatpush1.bf16.msra.mxu0 0
        %2084 = vmatprep.subr.bf16.mxu0 0
        %2085 = vmatpush1.bf16.msra.mxu0 0
        %2086 = vmatprep.subr.bf16.mxu0 0
        %2087 = vmatpush1.bf16.msra.mxu0 0
        %2088 = vmatprep.subr.bf16.mxu0 0
        %2089 = vmatpush1.bf16.msra.mxu0 0
        %2090 = vmatprep.subr.bf16.mxu0 0
        %2091 = vmatpush1.bf16.msra.mxu0 0
        %2092 = vmatprep.subr.bf16.mxu0 0
        %2093 = vmatpush1.bf16.msra.mxu0 0
        %2094 = vmatprep.subr.bf16.mxu0 0
        %2095 = vmatpush1.bf16.msra.mxu0 0
        %2096 = vmatprep.subr.bf16.mxu0 0
        %2097 = vmatpush1.bf16.msra.mxu0 0
        %2098 = vmatprep.subr.bf16.mxu0 0
        %2099 = vmatpush1.bf16.msra.mxu0 0
        %2100 = vmatprep.subr.bf16.mxu0 0
        %2101 = vmatpush1.bf16.msra.mxu0 0
        %2102 = vmatprep.subr.bf16.mxu0 0
        %2103 = vmatpush1.bf16.msra.mxu0 0
        %2104 = vmatprep.subr.bf16.mxu0 0
        %2105 = vmatpush1.bf16.msra.mxu0 0
        %2106 = vmatprep.mubr.bf16.mxu0 0
        %2107 = vmatmul.mubr.bf16.gmra.mrb[0].mxu0 %v2063
        %v2108 = vpop.f32.mrb[0].mxu0
        %v2109 = vadd.f32 %v756, %v2108
        %v2110 = vpop.f32.mrb[0].mxu0
        %v2111 = vpop.f32.mrb[0].mxu0
        %v2112 = vadd.f32 %v756, %v2111
        %v2113 = vpop.f32.mrb[0].mxu0
        %2114 = vmatprep.mubr.bf16.mxu0 0
        %2115 = vmatmul.mubr.bf16.gmra.mrb[0].mxu0 %v2066
        %v2116 = vpop.f32.mrb[0].mxu0
        %v2117 = vadd.f32 %v756, %v2116
        %v2118 = vpop.f32.mrb[0].mxu0
        %v2119 = vpop.f32.mrb[0].mxu0
        %v2120 = vadd.f32 %v756, %v2119
        %v2121 = vpop.f32.mrb[0].mxu0
        %2122 = vmatprep.mubr.bf16.mxu0 0
        %2123 = vmatmul.mubr.bf16.gmra.mrb[0].mxu0 %v2069
        %v2124 = vpop.f32.mrb[0].mxu0
        %v2125 = vadd.f32 %v756, %v2124
        %v2126 = vpop.f32.mrb[0].mxu0
        %v2127 = vpop.f32.mrb[0].mxu0
        %v2128 = vadd.f32 %v756, %v2127
        %v2129 = vpop.f32.mrb[0].mxu0
        %2130 = vmatprep.mubr.bf16.mxu0 0
        %2131 = vmatmul.mubr.bf16.gmra.mrb[0].mxu0 %v2072
        %v2132 = vpop.f32.mrb[0].mxu0
        %v2133 = vadd.f32 %v756, %v2132
        %v2134 = vpop.f32.mrb[0].mxu0
        %v2135 = vpop.f32.mrb[0].mxu0
        %v2136 = vadd.f32 %v756, %v2135
        %v2137 = vpop.f32.mrb[0].mxu0
        %2138 = vdwg.mxu0
        %v2139 = vmax.f32 %v2109, 0.0
        %v2140 = vmax.f32 %v2112, 0.0
        %v2141 = vmax.f32 %v2117, 0.0
        %v2142 = vmax.f32 %v2120, 0.0
        %v2143 = vmax.f32 %v2125, 0.0
        %v2144 = vmax.f32 %v2128, 0.0
        %v2145 = vmax.f32 %v2133, 0.0
        %v2146 = vmax.f32 %v2136, 0.0
        %v2147 = vpack.c.bf16 %v2140, %v2139
        %v2148 = vpack.c.bf16 %v2142, %v2141
        %v2149 = vpack.c.bf16 %v2144, %v2143
        %v2150 = vpack.c.bf16 %v2146, %v2145
        %2151 = vmatprep.subr.bf16.mxu0 0
        %2152 = vmatpush1.bf16.msra.mxu0 %v2147
        %2153 = vmatprep.subr.bf16.mxu0 0
        %2154 = vmatpush1.bf16.msra.mxu0 %v2148
        %2155 = vmatprep.subr.bf16.mxu0 0
        %2156 = vmatpush1.bf16.msra.mxu0 %v2149
        %2157 = vmatprep.subr.bf16.mxu0 0
        %2158 = vmatpush1.bf16.msra.mxu0 %v2150
        %2159 = vmatprep.subr.bf16.mxu0 0
        %2160 = vmatpush1.bf16.msra.mxu0 0
        %2161 = vmatprep.subr.bf16.mxu0 0
        %2162 = vmatpush1.bf16.msra.mxu0 0
        %2163 = vmatprep.subr.bf16.mxu0 0
        %2164 = vmatpush1.bf16.msra.mxu0 0
        %2165 = vmatprep.subr.bf16.mxu0 0
        %2166 = vmatpush1.bf16.msra.mxu0 0
        %2167 = vmatprep.subr.bf16.mxu0 0
        %2168 = vmatpush1.bf16.msra.mxu0 0
        %2169 = vmatprep.subr.bf16.mxu0 0
        %2170 = vmatpush1.bf16.msra.mxu0 0
        %2171 = vmatprep.subr.bf16.mxu0 0
        %2172 = vmatpush1.bf16.msra.mxu0 0
        %2173 = vmatprep.subr.bf16.mxu0 0
        %2174 = vmatpush1.bf16.msra.mxu0 0
        %2175 = vmatprep.subr.bf16.mxu0 0
        %2176 = vmatpush1.bf16.msra.mxu0 0
        %2177 = vmatprep.subr.bf16.mxu0 0
        %2178 = vmatpush1.bf16.msra.mxu0 0
        %2179 = vmatprep.subr.bf16.mxu0 0
        %2180 = vmatpush1.bf16.msra.mxu0 0
        %2181 = vmatprep.subr.bf16.mxu0 0
        %2182 = vmatpush1.bf16.msra.mxu0 0
        %2183 = vmatprep.mubr.bf16.mxu0 0
        %2184 = vmatmul.mubr.bf16.gmra.mrb[0].mxu0 %v1469
        %v2185 = vpop.f32.mrb[0].mxu0
        %v2186 = vadd.f32 0.0, %v2185
        %v2187 = vpop.f32.mrb[0].mxu0
        %v2188 = vpop.f32.mrb[0].mxu0
        %v2189 = vpop.f32.mrb[0].mxu0
        %2190 = vdwg.mxu0
        %v2191 = vadd.f32 %v1546, %v2186
        %s2192 = scalar_lea.vmem %s221, 144
        %v2193 = vld [vmem:[%s2192] sm:$0xf]
        %v2194 = vld [vmem:[%s2192 + $0x4] sm:$0xf]
        %v2195 = vld [vmem:[%s2192 + $0xc] sm:$0xf]
        %v2196 = vld [vmem:[%s2192 + $0x10] sm:$0xf]
        %v2197 = vld [vmem:[%s2192 + $0x18] sm:$0xf]
        %v2198 = vld [vmem:[%s2192 + $0x1c] sm:$0xf]
        %v2199 = vld [vmem:[%s2192 + $0x24] sm:$0xf]
        %v2200 = vld [vmem:[%s2192 + $0x28] sm:$0xf]
        %v2201 = vld [vmem:[%s2192 + $0x8] sm:$0x1]
        %v2202 = vld [vmem:[%s2192 + $0x14] sm:$0x1]
        %v2203 = vld [vmem:[%s2192 + $0x20] sm:$0x1]
        %v2204 = vld [vmem:[%s2192 + $0x2c] sm:$0x1]
        %v2205 = vld [vmem:[%s2192] sm:$0xe]
        %v2206 = vld [vmem:[%s2192 + $0xc] sm:$0xe]
        %v2207 = vld [vmem:[%s2192 + $0x18] sm:$0xe]
        %v2208 = vld [vmem:[%s2192 + $0x24] sm:$0xe]
        %s2209 = scalar_lea.vmem %s221, 156
        %v2210 = vld [vmem:[%s2209] sm:$0xf]
        %v2211 = vld [vmem:[%s2209 + $0x4] sm:$0xf]
        %v2212 = vld [vmem:[%s2209 + $0xc] sm:$0xf]
        %v2213 = vld [vmem:[%s2209 + $0x10] sm:$0xf]
        %v2214 = vld [vmem:[%s2209 + $0x18] sm:$0xf]
        %v2215 = vld [vmem:[%s2209 + $0x1c] sm:$0xf]
        %v2216 = vld [vmem:[%s2209 + $0x24] sm:$0xf]
        %v2217 = vld [vmem:[%s2209 + $0x28] sm:$0xf]
        %v2218 = vld [vmem:[%s2209 + $0x8] sm:$0x1]
        %v2219 = vld [vmem:[%s2209 + $0x14] sm:$0x1]
        %v2220 = vld [vmem:[%s2209 + $0x20] sm:$0x1]
        %v2221 = vld [vmem:[%s2209 + $0x2c] sm:$0x1]
        %v2222 = vld [vmem:[%s2209] sm:$0xe]
        %v2223 = vld [vmem:[%s2209 + $0xc] sm:$0xe]
        %v2224 = vld [vmem:[%s2209 + $0x18] sm:$0xe]
        %v2225 = vld [vmem:[%s2209 + $0x24] sm:$0xe]
        %s2226 = scalar_lea.vmem %s221, 168
        %v2227 = vld [vmem:[%s2226] sm:$0xf]
        %v2228 = vld [vmem:[%s2226 + $0x4] sm:$0xf]
        %v2229 = vld [vmem:[%s2226 + $0xc] sm:$0xf]
        %v2230 = vld [vmem:[%s2226 + $0x10] sm:$0xf]
        %v2231 = vld [vmem:[%s2226 + $0x18] sm:$0xf]
        %v2232 = vld [vmem:[%s2226 + $0x1c] sm:$0xf]
        %v2233 = vld [vmem:[%s2226 + $0x24] sm:$0xf]
        %v2234 = vld [vmem:[%s2226 + $0x28] sm:$0xf]
        %v2235 = vld [vmem:[%s2226 + $0x8] sm:$0x1]
        %v2236 = vld [vmem:[%s2226 + $0x14] sm:$0x1]
        %v2237 = vld [vmem:[%s2226 + $0x20] sm:$0x1]
        %v2238 = vld [vmem:[%s2226 + $0x2c] sm:$0x1]
        %v2239 = vld [vmem:[%s2226] sm:$0xe]
        %v2240 = vld [vmem:[%s2226 + $0xc] sm:$0xe]
        %v2241 = vld [vmem:[%s2226 + $0x18] sm:$0xe]
        %v2242 = vld [vmem:[%s2226 + $0x24] sm:$0xe]
        %v2251 = vunpack.c.l.b16 %v2193
        %v2252 = vunpack.c.l.b16 %v2194
        %v2253 = vunpack.c.l.b16 %v2195
        %v2254 = vunpack.c.l.b16 %v2196
        %v2255 = vunpack.c.l.b16 %v2197
        %v2256 = vunpack.c.l.b16 %v2198
        %v2257 = vunpack.c.l.b16 %v2199
        %v2258 = vunpack.c.l.b16 %v2200
        %v2259 = vpack.c.b16 %v2252, %v2251
        %v2260 = vpack.c.b16 %v2254, %v2253
        %v2261 = vpack.c.b16 %v2256, %v2255
        %v2262 = vpack.c.b16 %v2258, %v2257
        %v2267 = vunpack.c.l.b16 %v2201
        %v2268 = vunpack.c.l.b16 %v2202
        %v2269 = vunpack.c.l.b16 %v2203
        %v2270 = vunpack.c.l.b16 %v2204
        %v2271 = vpack.c.b16 %v2267, %v2267
        %v2272 = vpack.c.b16 %v2268, %v2268
        %v2273 = vpack.c.b16 %v2269, %v2269
        %v2274 = vpack.c.b16 %v2270, %v2270
        %v2276 = vshrl.u32 %v2259, 16
        %v2278 = vshll.u32 %v2259, 16
        %v2280 = vrot.slane %v2278, 1
        %v2281 = vor.u32 %v2276, %v2280
        %v2283 = vshll.u32 %v2271, 16
        %v2285 = vrot.slane %v2283, 1
        %v2286 = vsel %vm307, %v2281, %v2285
        %v2288 = vshrl.u32 %v2260, 16
        %v2290 = vshll.u32 %v2260, 16
        %v2292 = vrot.slane %v2290, 1
        %v2293 = vor.u32 %v2288, %v2292
        %v2295 = vshll.u32 %v2272, 16
        %v2297 = vrot.slane %v2295, 1
        %v2298 = vsel %vm307, %v2293, %v2297
        %v2300 = vshrl.u32 %v2261, 16
        %v2302 = vshll.u32 %v2261, 16
        %v2304 = vrot.slane %v2302, 1
        %v2305 = vor.u32 %v2300, %v2304
        %v2307 = vshll.u32 %v2273, 16
        %v2309 = vrot.slane %v2307, 1
        %v2310 = vsel %vm307, %v2305, %v2309
        %v2312 = vshrl.u32 %v2262, 16
        %v2314 = vshll.u32 %v2262, 16
        %v2316 = vrot.slane %v2314, 1
        %v2317 = vor.u32 %v2312, %v2316
        %v2319 = vshll.u32 %v2274, 16
        %v2321 = vrot.slane %v2319, 1
        %v2322 = vsel %vm307, %v2317, %v2321
        %2323 = vrot.lane.b32.xlu0 %v2286, 4
        %v2324 = vpop.permute.xlu0 %2323
        %2325 = vrot.lane.b32.xlu0 %v2298, 4
        %v2326 = vpop.permute.xlu0 %2325
        %2327 = vrot.lane.b32.xlu0 %v2310, 4
        %v2328 = vpop.permute.xlu0 %2327
        %2329 = vrot.lane.b32.xlu0 %v2322, 4
        %v2330 = vpop.permute.xlu0 %2329
        %v2335 = vunpack.c.l.b16 %v2205
        %v2336 = vunpack.c.l.b16 %v2206
        %v2337 = vunpack.c.l.b16 %v2207
        %v2338 = vunpack.c.l.b16 %v2208
        %v2339 = vpack.c.b16 %v2252, %v2335
        %v2340 = vpack.c.b16 %v2254, %v2336
        %v2341 = vpack.c.b16 %v2256, %v2337
        %v2342 = vpack.c.b16 %v2258, %v2338
        %v2343 = vrot.slane %v2339, 1
        %v2344 = vrot.slane %v2271, 1
        %v2345 = vsel %vm376, %v2343, %v2344
        %v2346 = vrot.slane %v2340, 1
        %v2347 = vrot.slane %v2272, 1
        %v2348 = vsel %vm376, %v2346, %v2347
        %v2349 = vrot.slane %v2341, 1
        %v2350 = vrot.slane %v2273, 1
        %v2351 = vsel %vm376, %v2349, %v2350
        %v2352 = vrot.slane %v2342, 1
        %v2353 = vrot.slane %v2274, 1
        %v2354 = vsel %vm376, %v2352, %v2353
        %2355 = vrot.lane.b32.xlu0 %v2345, 8
        %v2356 = vpop.permute.xlu0 %2355
        %2357 = vrot.lane.b32.xlu0 %v2348, 8
        %v2358 = vpop.permute.xlu0 %2357
        %2359 = vrot.lane.b32.xlu0 %v2351, 8
        %v2360 = vpop.permute.xlu0 %2359
        %2361 = vrot.lane.b32.xlu0 %v2354, 8
        %v2362 = vpop.permute.xlu0 %2361
        %v2371 = vunpack.c.l.b16 %v2210
        %v2372 = vunpack.c.l.b16 %v2211
        %v2373 = vunpack.c.l.b16 %v2212
        %v2374 = vunpack.c.l.b16 %v2213
        %v2375 = vunpack.c.l.b16 %v2214
        %v2376 = vunpack.c.l.b16 %v2215
        %v2377 = vunpack.c.l.b16 %v2216
        %v2378 = vunpack.c.l.b16 %v2217
        %v2379 = vpack.c.b16 %v2372, %v2371
        %v2380 = vpack.c.b16 %v2374, %v2373
        %v2381 = vpack.c.b16 %v2376, %v2375
        %v2382 = vpack.c.b16 %v2378, %v2377
        %2383 = vrot.lane.b32.xlu0 %v2379, 12
        %v2384 = vpop.permute.xlu0 %2383
        %2385 = vrot.lane.b32.xlu0 %v2380, 12
        %v2386 = vpop.permute.xlu0 %2385
        %2387 = vrot.lane.b32.xlu0 %v2381, 12
        %v2388 = vpop.permute.xlu0 %2387
        %2389 = vrot.lane.b32.xlu0 %v2382, 12
        %v2390 = vpop.permute.xlu0 %2389
        %v2395 = vunpack.c.l.b16 %v2218
        %v2396 = vunpack.c.l.b16 %v2219
        %v2397 = vunpack.c.l.b16 %v2220
        %v2398 = vunpack.c.l.b16 %v2221
        %v2399 = vpack.c.b16 %v2395, %v2395
        %v2400 = vpack.c.b16 %v2396, %v2396
        %v2401 = vpack.c.b16 %v2397, %v2397
        %v2402 = vpack.c.b16 %v2398, %v2398
        %v2404 = vshrl.u32 %v2379, 16
        %v2406 = vshll.u32 %v2379, 16
        %v2408 = vrot.slane %v2406, 1
        %v2409 = vor.u32 %v2404, %v2408
        %v2411 = vshll.u32 %v2399, 16
        %v2413 = vrot.slane %v2411, 1
        %v2414 = vsel %vm307, %v2409, %v2413
        %v2416 = vshrl.u32 %v2380, 16
        %v2418 = vshll.u32 %v2380, 16
        %v2420 = vrot.slane %v2418, 1
        %v2421 = vor.u32 %v2416, %v2420
        %v2423 = vshll.u32 %v2400, 16
        %v2425 = vrot.slane %v2423, 1
        %v2426 = vsel %vm307, %v2421, %v2425
        %v2428 = vshrl.u32 %v2381, 16
        %v2430 = vshll.u32 %v2381, 16
        %v2432 = vrot.slane %v2430, 1
        %v2433 = vor.u32 %v2428, %v2432
        %v2435 = vshll.u32 %v2401, 16
        %v2437 = vrot.slane %v2435, 1
        %v2438 = vsel %vm307, %v2433, %v2437
        %v2440 = vshrl.u32 %v2382, 16
        %v2442 = vshll.u32 %v2382, 16
        %v2444 = vrot.slane %v2442, 1
        %v2445 = vor.u32 %v2440, %v2444
        %v2447 = vshll.u32 %v2402, 16
        %v2449 = vrot.slane %v2447, 1
        %v2450 = vsel %vm307, %v2445, %v2449
        %2451 = vrot.lane.b32.xlu0 %v2414, 16
        %v2452 = vpop.permute.xlu0 %2451
        %2453 = vrot.lane.b32.xlu0 %v2426, 16
        %v2454 = vpop.permute.xlu0 %2453
        %2455 = vrot.lane.b32.xlu0 %v2438, 16
        %v2456 = vpop.permute.xlu0 %2455
        %2457 = vrot.lane.b32.xlu0 %v2450, 16
        %v2458 = vpop.permute.xlu0 %2457
        %v2463 = vunpack.c.l.b16 %v2222
        %v2464 = vunpack.c.l.b16 %v2223
        %v2465 = vunpack.c.l.b16 %v2224
        %v2466 = vunpack.c.l.b16 %v2225
        %v2467 = vpack.c.b16 %v2372, %v2463
        %v2468 = vpack.c.b16 %v2374, %v2464
        %v2469 = vpack.c.b16 %v2376, %v2465
        %v2470 = vpack.c.b16 %v2378, %v2466
        %v2471 = vrot.slane %v2467, 1
        %v2472 = vrot.slane %v2399, 1
        %v2473 = vsel %vm376, %v2471, %v2472
        %v2474 = vrot.slane %v2468, 1
        %v2475 = vrot.slane %v2400, 1
        %v2476 = vsel %vm376, %v2474, %v2475
        %v2477 = vrot.slane %v2469, 1
        %v2478 = vrot.slane %v2401, 1
        %v2479 = vsel %vm376, %v2477, %v2478
        %v2480 = vrot.slane %v2470, 1
        %v2481 = vrot.slane %v2402, 1
        %v2482 = vsel %vm376, %v2480, %v2481
        %2483 = vrot.lane.b32.xlu0 %v2473, 20
        %v2484 = vpop.permute.xlu0 %2483
        %2485 = vrot.lane.b32.xlu0 %v2476, 20
        %v2486 = vpop.permute.xlu0 %2485
        %2487 = vrot.lane.b32.xlu0 %v2479, 20
        %v2488 = vpop.permute.xlu0 %2487
        %2489 = vrot.lane.b32.xlu0 %v2482, 20
        %v2490 = vpop.permute.xlu0 %2489
        %v2499 = vunpack.c.l.b16 %v2227
        %v2500 = vunpack.c.l.b16 %v2228
        %v2501 = vunpack.c.l.b16 %v2229
        %v2502 = vunpack.c.l.b16 %v2230
        %v2503 = vunpack.c.l.b16 %v2231
        %v2504 = vunpack.c.l.b16 %v2232
        %v2505 = vunpack.c.l.b16 %v2233
        %v2506 = vunpack.c.l.b16 %v2234
        %v2507 = vpack.c.b16 %v2500, %v2499
        %v2508 = vpack.c.b16 %v2502, %v2501
        %v2509 = vpack.c.b16 %v2504, %v2503
        %v2510 = vpack.c.b16 %v2506, %v2505
        %2511 = vrot.lane.b32.xlu0 %v2507, 24
        %v2512 = vpop.permute.xlu0 %2511
        %2513 = vrot.lane.b32.xlu0 %v2508, 24
        %v2514 = vpop.permute.xlu0 %2513
        %2515 = vrot.lane.b32.xlu0 %v2509, 24
        %v2516 = vpop.permute.xlu0 %2515
        %2517 = vrot.lane.b32.xlu0 %v2510, 24
        %v2518 = vpop.permute.xlu0 %2517
        %v2523 = vunpack.c.l.b16 %v2235
        %v2524 = vunpack.c.l.b16 %v2236
        %v2525 = vunpack.c.l.b16 %v2237
        %v2526 = vunpack.c.l.b16 %v2238
        %v2527 = vpack.c.b16 %v2523, %v2523
        %v2528 = vpack.c.b16 %v2524, %v2524
        %v2529 = vpack.c.b16 %v2525, %v2525
        %v2530 = vpack.c.b16 %v2526, %v2526
        %v2532 = vshrl.u32 %v2507, 16
        %v2534 = vshll.u32 %v2507, 16
        %v2536 = vrot.slane %v2534, 1
        %v2537 = vor.u32 %v2532, %v2536
        %v2539 = vshll.u32 %v2527, 16
        %v2541 = vrot.slane %v2539, 1
        %v2542 = vsel %vm307, %v2537, %v2541
        %v2544 = vshrl.u32 %v2508, 16
        %v2546 = vshll.u32 %v2508, 16
        %v2548 = vrot.slane %v2546, 1
        %v2549 = vor.u32 %v2544, %v2548
        %v2551 = vshll.u32 %v2528, 16
        %v2553 = vrot.slane %v2551, 1
        %v2554 = vsel %vm307, %v2549, %v2553
        %v2556 = vshrl.u32 %v2509, 16
        %v2558 = vshll.u32 %v2509, 16
        %v2560 = vrot.slane %v2558, 1
        %v2561 = vor.u32 %v2556, %v2560
        %v2563 = vshll.u32 %v2529, 16
        %v2565 = vrot.slane %v2563, 1
        %v2566 = vsel %vm307, %v2561, %v2565
        %v2568 = vshrl.u32 %v2510, 16
        %v2570 = vshll.u32 %v2510, 16
        %v2572 = vrot.slane %v2570, 1
        %v2573 = vor.u32 %v2568, %v2572
        %v2575 = vshll.u32 %v2530, 16
        %v2577 = vrot.slane %v2575, 1
        %v2578 = vsel %vm307, %v2573, %v2577
        %2579 = vrot.lane.b32.xlu0 %v2542, 28
        %v2580 = vpop.permute.xlu0 %2579
        %2581 = vrot.lane.b32.xlu0 %v2554, 28
        %v2582 = vpop.permute.xlu0 %2581
        %2583 = vrot.lane.b32.xlu0 %v2566, 28
        %v2584 = vpop.permute.xlu0 %2583
        %2585 = vrot.lane.b32.xlu0 %v2578, 28
        %v2586 = vpop.permute.xlu0 %2585
        %v2591 = vunpack.c.l.b16 %v2239
        %v2592 = vunpack.c.l.b16 %v2240
        %v2593 = vunpack.c.l.b16 %v2241
        %v2594 = vunpack.c.l.b16 %v2242
        %v2595 = vpack.c.b16 %v2500, %v2591
        %v2596 = vpack.c.b16 %v2502, %v2592
        %v2597 = vpack.c.b16 %v2504, %v2593
        %v2598 = vpack.c.b16 %v2506, %v2594
        %v2599 = vrot.slane %v2595, 1
        %v2600 = vrot.slane %v2527, 1
        %v2601 = vsel %vm376, %v2599, %v2600
        %v2602 = vrot.slane %v2596, 1
        %v2603 = vrot.slane %v2528, 1
        %v2604 = vsel %vm376, %v2602, %v2603
        %v2605 = vrot.slane %v2597, 1
        %v2606 = vrot.slane %v2529, 1
        %v2607 = vsel %vm376, %v2605, %v2606
        %v2608 = vrot.slane %v2598, 1
        %v2609 = vrot.slane %v2530, 1
        %v2610 = vsel %vm376, %v2608, %v2609
        %2611 = vrot.lane.b32.xlu0 %v2601, 32
        %v2612 = vpop.permute.xlu0 %2611
        %2613 = vrot.lane.b32.xlu0 %v2604, 32
        %v2614 = vpop.permute.xlu0 %2613
        %2615 = vrot.lane.b32.xlu0 %v2607, 32
        %v2616 = vpop.permute.xlu0 %2615
        %2617 = vrot.lane.b32.xlu0 %v2610, 32
        %v2618 = vpop.permute.xlu0 %2617
        %v2620 = vsel %vm653, %v2259, %v2324
        %v2622 = vsel %vm653, %v2260, %v2326
        %v2624 = vsel %vm653, %v2261, %v2328
        %v2626 = vsel %vm653, %v2262, %v2330
        %v2628 = vsel %vm662, %v2620, %v2356
        %v2630 = vsel %vm662, %v2622, %v2358
        %v2632 = vsel %vm662, %v2624, %v2360
        %v2634 = vsel %vm662, %v2626, %v2362
        %v2636 = vsel %vm671, %v2628, %v2384
        %v2638 = vsel %vm671, %v2630, %v2386
        %v2640 = vsel %vm671, %v2632, %v2388
        %v2642 = vsel %vm671, %v2634, %v2390
        %v2644 = vsel %vm680, %v2636, %v2452
        %v2646 = vsel %vm680, %v2638, %v2454
        %v2648 = vsel %vm680, %v2640, %v2456
        %v2650 = vsel %vm680, %v2642, %v2458
        %v2652 = vsel %vm689, %v2644, %v2484
        %v2654 = vsel %vm689, %v2646, %v2486
        %v2656 = vsel %vm689, %v2648, %v2488
        %v2658 = vsel %vm689, %v2650, %v2490
        %v2660 = vsel %vm698, %v2652, %v2512
        %v2662 = vsel %vm698, %v2654, %v2514
        %v2664 = vsel %vm698, %v2656, %v2516
        %v2666 = vsel %vm698, %v2658, %v2518
        %v2668 = vsel %vm707, %v2660, %v2580
        %v2670 = vsel %vm707, %v2662, %v2582
        %v2672 = vsel %vm707, %v2664, %v2584
        %v2674 = vsel %vm707, %v2666, %v2586
        %v2676 = vsel %vm716, %v2668, %v2612
        %v2678 = vsel %vm716, %v2670, %v2614
        %v2680 = vsel %vm716, %v2672, %v2616
        %v2682 = vsel %vm716, %v2674, %v2618
        %v2683 = vsel %vm725, %v2676, 0
        %v2685 = vsel %vm725, %v2678, 0
        %v2687 = vsel %vm725, %v2680, 0
        %v2689 = vsel %vm725, %v2682, 0
        %v2691 = vunpack.c.l.bf16 %v2683
        %v2692 = vunpack.c.h.bf16 %v2683
        %v2693 = vunpack.c.l.bf16 %v2685
        %v2694 = vunpack.c.h.bf16 %v2685
        %v2695 = vunpack.c.l.bf16 %v2687
        %v2696 = vunpack.c.h.bf16 %v2687
        %v2697 = vunpack.c.l.bf16 %v2689
        %v2698 = vunpack.c.h.bf16 %v2689
        %v2699 = vpack.c.bf16 %v2692, %v2691
        %v2700 = vpack.c.bf16 %v2694, %v2693
        %v2701 = vpack.c.bf16 %v2696, %v2695
        %v2702 = vpack.c.bf16 %v2698, %v2697
        %v2704 = vsel %vm773, %v2699, 0
        %v2707 = vsel %vm773, %v2700, 0
        %v2710 = vsel %vm773, %v2701, 0
        %v2713 = vsel %vm773, %v2702, 0
        %2715 = vmatprep.subr.bf16.mxu0 0
        %2716 = vmatpush1.bf16.msra.mxu0 %v768
        %2717 = vmatprep.subr.bf16.mxu0 0
        %2718 = vmatpush1.bf16.msra.mxu0 %v769
        %2719 = vmatprep.subr.bf16.mxu0 0
        %2720 = vmatpush1.bf16.msra.mxu0 %v788
        %2721 = vmatprep.subr.bf16.mxu0 0
        %2722 = vmatpush1.bf16.msra.mxu0 0
        %2723 = vmatprep.subr.bf16.mxu0 0
        %2724 = vmatpush1.bf16.msra.mxu0 0
        %2725 = vmatprep.subr.bf16.mxu0 0
        %2726 = vmatpush1.bf16.msra.mxu0 0
        %2727 = vmatprep.subr.bf16.mxu0 0
        %2728 = vmatpush1.bf16.msra.mxu0 0
        %2729 = vmatprep.subr.bf16.mxu0 0
        %2730 = vmatpush1.bf16.msra.mxu0 0
        %2731 = vmatprep.subr.bf16.mxu0 0
        %2732 = vmatpush1.bf16.msra.mxu0 0
        %2733 = vmatprep.subr.bf16.mxu0 0
        %2734 = vmatpush1.bf16.msra.mxu0 0
        %2735 = vmatprep.subr.bf16.mxu0 0
        %2736 = vmatpush1.bf16.msra.mxu0 0
        %2737 = vmatprep.subr.bf16.mxu0 0
        %2738 = vmatpush1.bf16.msra.mxu0 0
        %2739 = vmatprep.subr.bf16.mxu0 0
        %2740 = vmatpush1.bf16.msra.mxu0 0
        %2741 = vmatprep.subr.bf16.mxu0 0
        %2742 = vmatpush1.bf16.msra.mxu0 0
        %2743 = vmatprep.subr.bf16.mxu0 0
        %2744 = vmatpush1.bf16.msra.mxu0 0
        %2745 = vmatprep.subr.bf16.mxu0 0
        %2746 = vmatpush1.bf16.msra.mxu0 0
        %2747 = vmatprep.mubr.bf16.mxu0 0
        %2748 = vmatmul.mubr.bf16.gmra.mrb[0].mxu0 %v2704
        %v2749 = vpop.f32.mrb[0].mxu0
        %v2750 = vadd.f32 %v756, %v2749
        %v2751 = vpop.f32.mrb[0].mxu0
        %v2752 = vpop.f32.mrb[0].mxu0
        %v2753 = vadd.f32 %v756, %v2752
        %v2754 = vpop.f32.mrb[0].mxu0
        %2755 = vmatprep.mubr.bf16.mxu0 0
        %2756 = vmatmul.mubr.bf16.gmra.mrb[0].mxu0 %v2707
        %v2757 = vpop.f32.mrb[0].mxu0
        %v2758 = vadd.f32 %v756, %v2757
        %v2759 = vpop.f32.mrb[0].mxu0
        %v2760 = vpop.f32.mrb[0].mxu0
        %v2761 = vadd.f32 %v756, %v2760
        %v2762 = vpop.f32.mrb[0].mxu0
        %2763 = vmatprep.mubr.bf16.mxu0 0
        %2764 = vmatmul.mubr.bf16.gmra.mrb[0].mxu0 %v2710
        %v2765 = vpop.f32.mrb[0].mxu0
        %v2766 = vadd.f32 %v756, %v2765
        %v2767 = vpop.f32.mrb[0].mxu0
        %v2768 = vpop.f32.mrb[0].mxu0
        %v2769 = vadd.f32 %v756, %v2768
        %v2770 = vpop.f32.mrb[0].mxu0
        %2771 = vmatprep.mubr.bf16.mxu0 0
        %2772 = vmatmul.mubr.bf16.gmra.mrb[0].mxu0 %v2713
        %v2773 = vpop.f32.mrb[0].mxu0
        %v2774 = vadd.f32 %v756, %v2773
        %v2775 = vpop.f32.mrb[0].mxu0
        %v2776 = vpop.f32.mrb[0].mxu0
        %v2777 = vadd.f32 %v756, %v2776
        %v2778 = vpop.f32.mrb[0].mxu0
        %2779 = vdwg.mxu0
        %v2780 = vmax.f32 %v2750, 0.0
        %v2781 = vmax.f32 %v2753, 0.0
        %v2782 = vmax.f32 %v2758, 0.0
        %v2783 = vmax.f32 %v2761, 0.0
        %v2784 = vmax.f32 %v2766, 0.0
        %v2785 = vmax.f32 %v2769, 0.0
        %v2786 = vmax.f32 %v2774, 0.0
        %v2787 = vmax.f32 %v2777, 0.0
        %v2788 = vpack.c.bf16 %v2781, %v2780
        %v2789 = vpack.c.bf16 %v2783, %v2782
        %v2790 = vpack.c.bf16 %v2785, %v2784
        %v2791 = vpack.c.bf16 %v2787, %v2786
        %2792 = vmatprep.subr.bf16.mxu0 0
        %2793 = vmatpush1.bf16.msra.mxu0 %v2788
        %2794 = vmatprep.subr.bf16.mxu0 0
        %2795 = vmatpush1.bf16.msra.mxu0 %v2789
        %2796 = vmatprep.subr.bf16.mxu0 0
        %2797 = vmatpush1.bf16.msra.mxu0 %v2790
        %2798 = vmatprep.subr.bf16.mxu0 0
        %2799 = vmatpush1.bf16.msra.mxu0 %v2791
        %2800 = vmatprep.subr.bf16.mxu0 0
        %2801 = vmatpush1.bf16.msra.mxu0 0
        %2802 = vmatprep.subr.bf16.mxu0 0
        %2803 = vmatpush1.bf16.msra.mxu0 0
        %2804 = vmatprep.subr.bf16.mxu0 0
        %2805 = vmatpush1.bf16.msra.mxu0 0
        %2806 = vmatprep.subr.bf16.mxu0 0
        %2807 = vmatpush1.bf16.msra.mxu0 0
        %2808 = vmatprep.subr.bf16.mxu0 0
        %2809 = vmatpush1.bf16.msra.mxu0 0
        %2810 = vmatprep.subr.bf16.mxu0 0
        %2811 = vmatpush1.bf16.msra.mxu0 0
        %2812 = vmatprep.subr.bf16.mxu0 0
        %2813 = vmatpush1.bf16.msra.mxu0 0
        %2814 = vmatprep.subr.bf16.mxu0 0
        %2815 = vmatpush1.bf16.msra.mxu0 0
        %2816 = vmatprep.subr.bf16.mxu0 0
        %2817 = vmatpush1.bf16.msra.mxu0 0
        %2818 = vmatprep.subr.bf16.mxu0 0
        %2819 = vmatpush1.bf16.msra.mxu0 0
        %2820 = vmatprep.subr.bf16.mxu0 0
        %2821 = vmatpush1.bf16.msra.mxu0 0
        %2822 = vmatprep.subr.bf16.mxu0 0
        %2823 = vmatpush1.bf16.msra.mxu0 0
        %2824 = vmatprep.mubr.bf16.mxu0 0
        %2825 = vmatmul.mubr.bf16.gmra.mrb[0].mxu0 %v1469
        %v2826 = vpop.f32.mrb[0].mxu0
        %v2827 = vadd.f32 0.0, %v2826
        %v2828 = vpop.f32.mrb[0].mxu0
        %v2829 = vpop.f32.mrb[0].mxu0
        %v2830 = vpop.f32.mrb[0].mxu0
        %2831 = vdwg.mxu0
        %v2832 = vadd.f32 %v2191, %v2827
        %v2833 = vmul.f32 %v2832, 0.00390625
        %v2834 = vpack.c.bf16 %v2833, %v2833
        %v2835 = vld [vmem:[%s3] sm:$0xf]
        %v2836 = vld [vmem:[%s3 + $0x4] sm:$0xf]
        %v2837 = vld [vmem:[%s3 + $0x8] sm:$0xf]
        %v2838 = vld [vmem:[%s3 + $0xc] sm:$0xf]
        %v2839 = vld [vmem:[%s3 + $0x10] sm:$0xf]
        %v2840 = vld [vmem:[%s3 + $0x14] sm:$0xf]
        %v2841 = vld [vmem:[%s3 + $0x18] sm:$0xf]
        %v2842 = vld [vmem:[%s3 + $0x1c] sm:$0xf]
        %v2843 = vld [vmem:[%s3 + $0x20] sm:$0xf]
        %v2844 = vld [vmem:[%s3 + $0x24] sm:$0xf]
        %v2845 = vld [vmem:[%s3 + $0x28] sm:$0xf]
        %v2846 = vld [vmem:[%s3 + $0x2c] sm:$0xf]
        %v2847 = vld [vmem:[%s3 + $0x30] sm:$0xf]
        %v2848 = vld [vmem:[%s3 + $0x34] sm:$0xf]
        %v2849 = vld [vmem:[%s3 + $0x38] sm:$0xf]
        %v2850 = vld [vmem:[%s3 + $0x3c] sm:$0xf]
        %v2851 = vld [vmem:[%s4] sm:$0x1]
        %v2868 = vunpack.c.l.b16 %v2835
        %v2869 = vunpack.c.l.b16 %v2836
        %v2870 = vunpack.c.l.b16 %v2837
        %v2871 = vunpack.c.l.b16 %v2838
        %v2872 = vunpack.c.l.b16 %v2839
        %v2873 = vunpack.c.l.b16 %v2840
        %v2874 = vunpack.c.l.b16 %v2841
        %v2875 = vunpack.c.l.b16 %v2842
        %v2876 = vunpack.c.l.b16 %v2843
        %v2877 = vunpack.c.l.b16 %v2844
        %v2878 = vunpack.c.l.b16 %v2845
        %v2879 = vunpack.c.l.b16 %v2846
        %v2880 = vunpack.c.l.b16 %v2847
        %v2881 = vunpack.c.l.b16 %v2848
        %v2882 = vunpack.c.l.b16 %v2849
        %v2883 = vunpack.c.l.b16 %v2850
        %v2884 = vpack.c.b16 %v2869, %v2868
        %v2885 = vpack.c.b16 %v2871, %v2870
        %v2886 = vpack.c.b16 %v2873, %v2872
        %v2887 = vpack.c.b16 %v2875, %v2874
        %v2888 = vpack.c.b16 %v2877, %v2876
        %v2889 = vpack.c.b16 %v2879, %v2878
        %v2890 = vpack.c.b16 %v2881, %v2880
        %v2891 = vpack.c.b16 %v2883, %v2882
        %2900 = vmatprep.subr.bf16.mxu0 0
        %2901 = vmatpush1.bf16.msra.mxu0 %v2884
        %2902 = vmatprep.subr.bf16.mxu0 0
        %2903 = vmatpush1.bf16.msra.mxu0 %v2885
        %2904 = vmatprep.subr.bf16.mxu0 0
        %2905 = vmatpush1.bf16.msra.mxu0 %v2886
        %2906 = vmatprep.subr.bf16.mxu0 0
        %2907 = vmatpush1.bf16.msra.mxu0 %v2887
        %2908 = vmatprep.subr.bf16.mxu0 0
        %2909 = vmatpush1.bf16.msra.mxu0 %v2888
        %2910 = vmatprep.subr.bf16.mxu0 0
        %2911 = vmatpush1.bf16.msra.mxu0 %v2889
        %2912 = vmatprep.subr.bf16.mxu0 0
        %2913 = vmatpush1.bf16.msra.mxu0 %v2890
        %2914 = vmatprep.subr.bf16.mxu0 0
        %2915 = vmatpush1.bf16.msra.mxu0 %v2891
        %2916 = vmatprep.subr.bf16.mxu0 0
        %2917 = vmatpush1.bf16.msra.mxu0 0
        %2918 = vmatprep.subr.bf16.mxu0 0
        %2919 = vmatpush1.bf16.msra.mxu0 0
        %2920 = vmatprep.subr.bf16.mxu0 0
        %2921 = vmatpush1.bf16.msra.mxu0 0
        %2922 = vmatprep.subr.bf16.mxu0 0
        %2923 = vmatpush1.bf16.msra.mxu0 0
        %2924 = vmatprep.subr.bf16.mxu0 0
        %2925 = vmatpush1.bf16.msra.mxu0 0
        %2926 = vmatprep.subr.bf16.mxu0 0
        %2927 = vmatpush1.bf16.msra.mxu0 0
        %2928 = vmatprep.subr.bf16.mxu0 0
        %2929 = vmatpush1.bf16.msra.mxu0 0
        %2930 = vmatprep.subr.bf16.mxu0 0
        %2931 = vmatpush1.bf16.msra.mxu0 0
        %2932 = vmatprep.mubr.bf16.mxu0 0
        %2933 = vmatmul.mubr.bf16.gmra.mrb[0].mxu0 %v2834
        %v2934 = vpop.f32.mrb[0].mxu0
        %v2935 = vadd.f32 %v2851, %v2934
        %v2936 = vpop.f32.mrb[0].mxu0
        %v2937 = vpop.f32.mrb[0].mxu0
        %v2938 = vpop.f32.mrb[0].mxu0
        %2939 = vdwg.mxu0
        %v2940 = vand.u32 2147483647, %v2935
        %v2941 = vsub.f32 0.0, %v2940
        %v2942 = vmul.f32 %v2941, 1.442695
        %v2943 = vpow.pop %v2942
        %v2944 = vadd.f32 %v2943, 1.0
        %v2945 = vrcp.pop %v2944
        %v2946 = vmul.f32 1.0, %v2945
        %vm2947 = vcmp.ge.f32.partialorder %v2935, 0.0
        %v2948 = vmul.f32 %v2943, %v2946
        %v2949 = vsel %vm2947, %v2946, %v2948
        %2950 = vst [vmem:[%s216] sm:$0x1] %v2949
        %s2951 = sand.u32 %s137, 1
        %s2952 = scalar_lea.sflag [#allocation3], %s2951
        %s2953 = sand.u32 %s137, 1
        %s2954 = scalar_lea.vmem [#allocation2], %s2953
        // Predicated region
        $region41: #{flag_classifier_forward.1} parent=39 // pred_check
          %p2955 = pneg %p147
        $region42: #{flag_classifier_forward.1} parent=39 // pred_check_branch
          %2957 = sbr.rel (%p2955) target = $region44
        $region43: #{flag_classifier_forward.1} parent=39 // pred_region
          %s2959 = ssub.s32 16, 16
          %2960 = vsyncadd %s2952, %s2959
          %s2961 = smul.addr %s19, 16
          %s2962 = scalar_lea.hbm %s5, %s2961
          %s2964 = sshll.u32 %s2954, 4
          %s2965 = int_to_ptr.vmem [resolvable:$true] %s2964
          %2967 = dma.vmem_to_hbm [thread:$0]  %s2965, 16, %s2962, %s2952
        $region44: #{flag_classifier_forward.1} parent=39 // pred_fallthru
          _
      $region40: #{flag_classifier_forward.1} parent=5 // pred_fallthru
        _
      %p2968 = scmp.le.s32.totalorder 2, %s14
      // Predicated region
      $region45: #{flag_classifier_forward.1} parent=5 // pred_check
        %p2969 = pneg %p2968
      $region46: #{flag_classifier_forward.1} parent=5 // pred_check_branch
        %2971 = sbr.rel (%p2969) target = $region48
      $region47: #{flag_classifier_forward.1} parent=5 // pred_region
        %s2972 = ssub.s32 %s14, 2
        // Predicated region
        $region49: #{flag_classifier_forward.1} parent=47 // pred_check
          %p2973 = pneg %p153
        $region50: #{flag_classifier_forward.1} parent=47 // pred_check_branch
          %2975 = sbr.rel (%p2973) target = $region52
        $region51: #{flag_classifier_forward.1} parent=47 // pred_region
          %s2976 = sand.u32 %s138, 1
          %s2977 = scalar_lea.sflag [#allocation3], %s2976
          %s2978 = sand.u32 %s138, 1
          %s2979 = scalar_lea.vmem [#allocation2], %s2978
          %2980 = dma.done %s2977, 16
        $region52: #{flag_classifier_forward.1} parent=47 // pred_fallthru
          _
      $region48: #{flag_classifier_forward.1} parent=5 // pred_fallthru
        _
    $region6: #{flag_classifier_forward.1} parent=1 // loop_footer
      %s18 = sadd.s32 1, %s14
    $region7: #{flag_classifier_forward.1} parent=1 // loop_footer_branch
      %13 = sbr.rel target = $region3
    $region8: #{flag_classifier_forward.1} parent=1 // loop_exit
      _
    %2981 = vsyncpa [#allocation3], 1
    %s2982 = scalar_lea.sflag [#allocation3], 1
    %2983 = vsyncpa %s2982, 1

</llo_original>
